<compile_context>
chip_gen: v7x
topology: tpu7x:2x2x1
jax: 0.10.0
libtpu: 0.0.40
codegen_flags: <defaults>
</compile_context>

<pallas_src>
import functools

import jax
import jax.numpy as jnp
from jax import lax
from jax.experimental import pallas as pl
from jax.experimental.pallas import tpu as pltpu

_INV_SQRT2 = 0.7071067811865476


def _gelu(x):
    """Exact (erf-based) GELU, matching torch.nn.GELU() default.

    erf via Abramowitz & Stegun 7.1.26 (|err| < 1.5e-7), algebraically rewritten as
        gelu(x) = relu(x) - 0.5*|x| * poly(t) * exp(-z^2),   z = |x| / sqrt(2)
    which removes the sign select of the usual formulation (VPU ops + one EUP exp).
    """
    z = jnp.abs(x) * _INV_SQRT2
    t = 1.0 / (1.0 + 0.3275911 * z)
    poly = ((((1.061405429 * t - 1.453152027) * t + 1.421413741) * t
             - 0.284496736) * t + 0.254829592) * t
    return jnp.maximum(x, 0.0) - (_INV_SQRT2 * z) * poly * jnp.exp(-z * z)


# ----------------------------------------------------------------------------
# In-kernel depthwise 3x3 conv on the flattened token axis (lane axis), roll-based.
# ----------------------------------------------------------------------------
def _dwconv3x3_tokens(x, w_taps, lmask, rmask, tmask, bmask, W):
    """Depthwise 3x3 conv (zero padding) on a (C, n) tile, n = H*W row-major tokens.

    Lane shifts use pltpu.roll (XLU) instead of a padded buffer + unaligned slices.
    Wrap-around contributions are killed by the (1, n) validity masks:
      lmask: 0 where col == 0      rmask: 0 where col == W-1
      tmask: 0 where row == 0      bmask: 0 where row == H-1
    Decomposed as three horizontal 1D convs (one per kernel row) followed by a masked
    vertical combine.  w_taps is (C, 9) with tap order t = di*3 + dj.
    """
    n = x.shape[1]
    xl = pltpu.roll(x, shift=1 % n, axis=1) * lmask            # x[t-1]
    xr = pltpu.roll(x, shift=(n - 1) % n, axis=1) * rmask      # x[t+1]
    h_top = xl * w_taps[:, 0:1] + x * w_taps[:, 1:2] + xr * w_taps[:, 2:3]
    h_mid = xl * w_taps[:, 3:4] + x * w_taps[:, 4:5] + xr * w_taps[:, 5:6]
    h_bot = xl * w_taps[:, 6:7] + x * w_taps[:, 7:8] + xr * w_taps[:, 8:9]
    return (pltpu.roll(h_top, shift=W % n, axis=1) * tmask        # row above
            + h_mid
            + pltpu.roll(h_bot, shift=(n - W) % n, axis=1) * bmask)  # row below


# ----------------------------------------------------------------------------
# Single fused kernel: Attention + pos_emb + residual, then FeedForward + residual.
# ----------------------------------------------------------------------------
def _transformer_kernel(x_ref, wqkv_ref, resc_ref, amask_ref, wp_ref, bp_ref,
                        wpos_ref, masks_ref, w1_ref, wdw_ref, w3_ref, o_ref,
                        *, heads, dim_head, W, mxu_dtype):
    f32 = jnp.float32
    hd = heads * dim_head
    x = x_ref[0]                                               # (c, n)

    lmask = masks_ref[0:1, :]
    rmask = masks_ref[1:2, :]
    tmask = masks_ref[2:3, :]
    bmask = masks_ref[3:4, :]

    # ---- Attention: fused q/k/v projection (one MXU pass, bf16 operands, f32 acc) ----
    qkv = jnp.dot(wqkv_ref[...], x.astype(mxu_dtype), preferred_element_type=f32)  # (3hd, n)
    q = qkv[0:hd, :]
    k = qkv[hd:2 * hd, :]
    v = qkv[2 * hd:3 * hd, :]

    # F.normalize(p=2, dim=-1): L2-normalize each (head, channel) row over tokens (f32).
    qn = q * lax.rsqrt(jnp.maximum(jnp.sum(q * q, axis=1, keepdims=True), 1e-24))
    kn = k * lax.rsqrt(jnp.maximum(jnp.sum(k * k, axis=1, keepdims=True), 1e-24))
    kn = kn * resc_ref[...]                 # fold the per-head rescale into the k rows

    # All heads at once: block-diagonal-masked (hd, hd) Gram == per-head softmax.
    attn = lax.dot_general(kn.astype(mxu_dtype), qn.astype(mxu_dtype),
                           (((1,), (1,)), ((), ())), preferred_element_type=f32)
    attn = attn + amask_ref[...]
    attn = attn - jnp.max(attn, axis=-1, keepdims=True)
    e = jnp.exp(attn)
    attn = e * pl.reciprocal(jnp.sum(e, axis=-1, keepdims=True), approx=True)

    xo = jnp.dot(attn.astype(mxu_dtype), v.astype(mxu_dtype),
                 preferred_element_type=f32)                                        # (hd, n)
    out_c = jnp.dot(wp_ref[...], xo.astype(mxu_dtype),
                    preferred_element_type=f32) + bp_ref[...]                       # (c, n)

    # ---- pos_emb depthwise 3x3 conv + residual (attn(x) + x), all f32 ----
    xf = x.astype(f32)
    y = out_c + _dwconv3x3_tokens(xf, wpos_ref[...], lmask, rmask, tmask, bmask, W) + xf

    # ---- FeedForward: 1x1 -> GELU -> dw3x3 -> GELU -> 1x1, channel-chunked ----
    # The 4c hidden channels are independent through the depthwise conv and GELU, so
    # chunking over channels bounds live FFN intermediates to (chunk, n) with no token
    # halos; each chunk's contribution is accumulated onto the residual carry.
    y_mxu = y.astype(mxu_dtype)
    n_chunks = w1_ref.shape[0]

    def ffn_chunk(ci, acc):
        h1 = _gelu(jnp.dot(w1_ref[ci], y_mxu, preferred_element_type=f32))          # (ck, n)
        h2 = _gelu(_dwconv3x3_tokens(h1, wdw_ref[ci], lmask, rmask, tmask, bmask, W))
        return acc + jnp.dot(w3_ref[ci], h2.astype(mxu_dtype),
                             preferred_element_type=f32)                            # (c, n)

    out = lax.fori_loop(0, n_chunks, ffn_chunk, y)          # ff(x) + x
    o_ref[0] = out.astype(o_ref.dtype)


# ----------------------------------------------------------------------------
# Wrapper
# ----------------------------------------------------------------------------
def _auto_ffn_chunk(c4, target=512):
    """Largest multiple-of-8 divisor of c4 that is <= target (else c4 itself)."""
    if c4 <= target:
        return c4
    best = c4
    for d in range(8, target + 1, 8):
        if c4 % d == 0:
            best = d
    return best


def transformer_forward(x_nchw, p, *, heads, dim_head,
                        mxu_dtype=jnp.bfloat16, ffn_channel_chunk=None):
    b, c, H, W = x_nchw.shape
    n = H * W
    f32 = jnp.float32
    hd = heads * dim_head
    c4 = 4 * c
    assert hd % 8 == 0, "heads*dim_head must be a multiple of 8 (sublane alignment)"

    if ffn_channel_chunk is None:
        ffn_channel_chunk = _auto_ffn_chunk(c4)
    assert c4 % ffn_channel_chunk == 0, "ffn_channel_chunk must divide 4*dim"
    n_chunks = c4 // ffn_channel_chunk
    ck = ffn_channel_chunk

    mxu = jnp.dtype(mxu_dtype)

    # NCHW is already channel-major: (b, c, H, W) -> (b, c, n) is a free reshape.
    x_flat = x_nchw.reshape(b, c, n)

    # Weight prep (tiny, trace-time only).  Pure-MXU operands are pre-cast to `mxu`
    # (bf16 by default: halves their DMA, no per-step cast); anything touched by VPU
    # math / residuals / masks stays f32.
    wqkv = jnp.concatenate([p["wq"], p["wk"], p["wv"]], axis=0).astype(mxu)        # (3hd, c)
    wp = p["wp"].astype(mxu)                                                       # (c, hd)
    w1_c = p["w1"].astype(mxu).reshape(n_chunks, ck, c)                            # (nc, ck, c)
    w3_c = jnp.moveaxis(p["w3"].reshape(c, n_chunks, ck), 1, 0).astype(mxu)        # (nc, c, ck)

    resc = jnp.repeat(p["rescale"].reshape(heads), dim_head).reshape(hd, 1).astype(f32)
    head_id = jnp.arange(hd) // dim_head
    amask = jnp.where(head_id[:, None] == head_id[None, :], 0.0, -1e30).astype(f32)
    bp = p["bp"].reshape(c, 1).astype(f32)
    wpos = p["w_pos"].reshape(c, 9).astype(f32)                                    # taps di*3+dj
    wdw_c = p["w_dw"].reshape(c4, 9).astype(f32).reshape(n_chunks, ck, 9)

    tok = jnp.arange(n)
    col = tok % W
    masks = jnp.stack([col != 0,            # left neighbour valid
                       col != W - 1,        # right neighbour valid
                       tok >= W,            # row above valid
                       tok < n - W,         # row below valid
                       ]).astype(f32)                                              # (4, n)

    def batch_spec():
        return pl.BlockSpec((1, c, n), lambda i: (i, 0, 0))

    def full_spec(a):
        nd = a.ndim
        return pl.BlockSpec(a.shape, lambda i, _nd=nd: (0,) * _nd)

    weights = (wqkv, resc, amask, wp, bp, wpos, masks, w1_c, wdw_c, w3_c)

    # Scoped-VMEM budget: per-step live activations + weights + double-buffered I/O,
    # with headroom.  Clamped to 64 MiB so the request is valid on v7x too.
    act_rows = 3 * hd + 2 * hd + hd + 4 * c + 8 * ck
    est = (4 * n * act_rows
           + 2 * 2 * c * n * (x_flat.dtype.itemsize + 4)
           + sum(int(a.size) * a.dtype.itemsize for a in weights))
    vmem_limit = int(min(64 * 2**20, max(32 * 2**20, 2 * est)))

    # TODO(synk): for b == 1 on v7x (2 TensorCores), add a parallel token/FFN-chunk grid
    # axis so both cores are busy; batch-only parallelism leaves one core idle.
    out = pl.pallas_call(
        functools.partial(_transformer_kernel, heads=heads, dim_head=dim_head,
                          W=W, mxu_dtype=mxu),
        out_shape=jax.ShapeDtypeStruct((b, c, n), f32),
        grid=(b,),
        in_specs=[batch_spec()] + [full_spec(a) for a in weights],
        out_specs=batch_spec(),
        compiler_params=pltpu.CompilerParams(
            dimension_semantics=("parallel",),
            vmem_limit_bytes=vmem_limit),
    )(x_flat, *weights)

    return out.reshape(b, c, H, W)                                                 # back to NCHW


# ----------------------------------------------------------------------------
# Pure-JAX reference (mirrors the PyTorch forward op-for-op)
# ----------------------------------------------------------------------------
def _reference_forward(x_nchw, p, heads, dim_head):
    b, c, H, W = x_nchw.shape
    n = H * W
    x = jnp.transpose(x_nchw, (0, 2, 3, 1)).reshape(b, n, c)
    q_inp, k_inp, v_inp = x @ p["wq"].T, x @ p["wk"].T, x @ p["wv"].T

    def split(t):  # b n (h d) -> b h n d
        return jnp.transpose(t.reshape(b, n, heads, dim_head), (0, 2, 1, 3))

    q, k, v = (jnp.swapaxes(split(t), -2, -1) for t in (q_inp, k_inp, v_inp))  # b h d n

    def l2n(t):
        return t / jnp.maximum(jnp.linalg.norm(t, axis=-1, keepdims=True), 1e-12)

    q, k = l2n(q), l2n(k)
    attn = (k @ jnp.swapaxes(q, -2, -1)) * p["rescale"].reshape(1, heads, 1, 1)
    attn = jax.nn.softmax(attn, axis=-1)
    xo = attn @ v                                                    # b h d n
    xo = jnp.transpose(xo, (0, 3, 1, 2)).reshape(b, n, heads * dim_head)
    out_c = (xo @ p["wp"].T + p["bp"]).reshape(b, H, W, c)

    x_nhwc = jnp.transpose(x_nchw, (0, 2, 3, 1))

    def dw(xh, wC33):
        xp = jnp.pad(xh, ((0, 0), (1, 1), (1, 1), (0, 0)))
        acc = 0.0
        for di in range(3):
            for dj in range(3):
                acc = acc + xp[:, di:di + H, dj:dj + W, :] * wC33[:, di, dj][None, None, None, :]
        return acc

    y = out_c + dw(x_nhwc, p["w_pos"]) + x_nhwc                      # attn(x) + x
    h1 = _gelu(y.reshape(b, n, c) @ p["w1"].T).reshape(b, H, W, -1)
    h2 = _gelu(dw(h1, p["w_dw"]))
    out = (h2.reshape(b, n, -1) @ p["w3"].T).reshape(b, H, W, c) + y  # ff(x) + x
    return jnp.transpose(out, (0, 3, 1, 2))


# ----------------------------------------------------------------------------
# Deterministic parameter init (shapes mirror the PyTorch module; depthwise conv
# weights are (C, 3, 3), i.e. the Conv2d weight with the singleton dim squeezed)
# ----------------------------------------------------------------------------
def init_params(key, dim, heads, dim_head):
    hd = heads * dim_head
    ks = jax.random.split(key, 9)
    s = 0.1
    return {
        "wq": s * jax.random.normal(ks[0], (hd, dim), jnp.float32),
        "wk": s * jax.random.normal(ks[1], (hd, dim), jnp.float32),
        "wv": s * jax.random.normal(ks[2], (hd, dim), jnp.float32),
        "rescale": jnp.ones((heads,), jnp.float32),                  # torch.ones(heads,1,1)
        "wp": s * jax.random.normal(ks[3], (dim, hd), jnp.float32),
        "bp": s * jax.random.normal(ks[4], (dim,), jnp.float32),
        "w_pos": s * jax.random.normal(ks[5], (dim, 3, 3), jnp.float32),
        "w1": s * jax.random.normal(ks[6], (4 * dim, dim), jnp.float32),
        "w_dw": s * jax.random.normal(ks[7], (4 * dim, 3, 3), jnp.float32),
        "w3": s * jax.random.normal(ks[8], (dim, 4 * dim), jnp.float32),
    }


if __name__ == "__main__":
    DIM, HEADS, DIM_HEAD = 8, 2, 8
    B, H, W = 2, 16, 16

    key = jax.random.PRNGKey(0)
    kx, kp = jax.random.split(key)
    x = jax.random.normal(kx, (B, DIM, H, W), jnp.float32)           # NCHW, like PyTorch
    params = init_params(kp, DIM, HEADS, DIM_HEAD)

    ref = _reference_forward(x, params, HEADS, DIM_HEAD)

    # 1) exact-math path: f32 MXU operands, FFN channel-chunked (2 chunks of 16) to
    #    exercise the VMEM-bounded fori_loop path.  Tight tolerance.
    fwd_f32 = jax.jit(functools.partial(transformer_forward, heads=HEADS, dim_head=DIM_HEAD,
                                        mxu_dtype=jnp.float32, ffn_channel_chunk=16))
    out_f32 = jax.block_until_ready(fwd_f32(x, params))
    assert out_f32.shape == x.shape, f"shape mismatch {out_f32.shape} vs {x.shape}"
    err_f32 = float(jnp.max(jnp.abs(out_f32 - ref)))
    assert err_f32 < 1e-3, f"f32 path mismatch, max abs err = {err_f32}"

    # 2) fast path (default): bf16 MXU operands with f32 accumulation / residuals.
    fwd_bf16 = jax.jit(functools.partial(transformer_forward, heads=HEADS, dim_head=DIM_HEAD))
    out_bf16 = jax.block_until_ready(fwd_bf16(x, params))
    err_bf16 = float(jnp.max(jnp.abs(out_bf16 - ref)))
    assert err_bf16 < 5e-2, f"bf16 path mismatch, max abs err = {err_bf16}"

    print("KERNEL_OK")
</pallas_src>

<mosaic_0001>
module attributes {stable_mosaic.version = 11 : i64} {
  func.func @_transformer_kernel(%arg0: i32, %arg1: memref<1x8x256xf32, #tpu.memory_space<vmem>>, %arg2: memref<48x8xf32, #tpu.memory_space<vmem>>, %arg3: memref<16x1xf32, #tpu.memory_space<vmem>>, %arg4: memref<16x16xf32, #tpu.memory_space<vmem>>, %arg5: memref<8x16xf32, #tpu.memory_space<vmem>>, %arg6: memref<8x1xf32, #tpu.memory_space<vmem>>, %arg7: memref<8x9xf32, #tpu.memory_space<vmem>>, %arg8: memref<4x256xf32, #tpu.memory_space<vmem>>, %arg9: memref<2x16x8xf32, #tpu.memory_space<vmem>>, %arg10: memref<2x16x9xf32, #tpu.memory_space<vmem>>, %arg11: memref<2x8x16xf32, #tpu.memory_space<vmem>>, %arg12: memref<1x8x256xf32, #tpu.memory_space<vmem>>) attributes {dimension_semantics = [#tpu.dimension_semantics<parallel>], iteration_bounds = array<i64: 2>, scalar_prefetch = 0 : i64, scratch_operands = 0 : i64, tpu.core_type = #tpu.core_type<tc>, window_params = [{transform_indices = @transform_0, window_bounds = array<i64: 1, 8, 256>}, {pipeline_mode = #tpu.pipeline_mode<synchronous>, transform_indices = @transform_1, window_bounds = array<i64: 48, 8>}, {pipeline_mode = #tpu.pipeline_mode<synchronous>, transform_indices = @transform_2, window_bounds = array<i64: 16, 1>}, {pipeline_mode = #tpu.pipeline_mode<synchronous>, transform_indices = @transform_3, window_bounds = array<i64: 16, 16>}, {pipeline_mode = #tpu.pipeline_mode<synchronous>, transform_indices = @transform_4, window_bounds = array<i64: 8, 16>}, {pipeline_mode = #tpu.pipeline_mode<synchronous>, transform_indices = @transform_5, window_bounds = array<i64: 8, 1>}, {pipeline_mode = #tpu.pipeline_mode<synchronous>, transform_indices = @transform_6, window_bounds = array<i64: 8, 9>}, {pipeline_mode = #tpu.pipeline_mode<synchronous>, transform_indices = @transform_7, window_bounds = array<i64: 4, 256>}, {pipeline_mode = #tpu.pipeline_mode<synchronous>, transform_indices = @transform_8, window_bounds = array<i64: 2, 16, 8>}, {pipeline_mode = #tpu.pipeline_mode<synchronous>, transform_indices = @transform_9, window_bounds = array<i64: 2, 16, 9>}, {pipeline_mode = #tpu.pipeline_mode<synchronous>, transform_indices = @transform_10, window_bounds = array<i64: 2, 8, 16>}, {transform_indices = @transform_11, window_bounds = array<i64: 1, 8, 256>}]} {
    %c0 = arith.constant 0 : index
    %c0_0 = arith.constant 0 : index
    %c0_1 = arith.constant 0 : index
    %0 = vector.load %arg1[%c0, %c0_0, %c0_1] : memref<1x8x256xf32, #tpu.memory_space<vmem>>, vector<1x8x256xf32>
    %1 = vector.shape_cast %0 : vector<1x8x256xf32> to vector<8x256xf32>
    %c0_2 = arith.constant 0 : index
    %c0_3 = arith.constant 0 : index
    %2 = vector.load %arg8[%c0_2, %c0_3] : memref<4x256xf32, #tpu.memory_space<vmem>>, vector<1x256xf32>
    %c1 = arith.constant 1 : index
    %c0_4 = arith.constant 0 : index
    %3 = vector.load %arg8[%c1, %c0_4] : memref<4x256xf32, #tpu.memory_space<vmem>>, vector<1x256xf32>
    %c2 = arith.constant 2 : index
    %c0_5 = arith.constant 0 : index
    %4 = vector.load %arg8[%c2, %c0_5] : memref<4x256xf32, #tpu.memory_space<vmem>>, vector<1x256xf32>
    %c3 = arith.constant 3 : index
    %c0_6 = arith.constant 0 : index
    %5 = vector.load %arg8[%c3, %c0_6] : memref<4x256xf32, #tpu.memory_space<vmem>>, vector<1x256xf32>
    %c0_7 = arith.constant 0 : index
    %c0_8 = arith.constant 0 : index
    %6 = vector.load %arg2[%c0_7, %c0_8] : memref<48x8xf32, #tpu.memory_space<vmem>>, vector<48x8xf32>
    %cst = arith.constant dense<0.000000e+00> : vector<48x256xf32>
    %7 = tpu.matmul %6, %1, %cst {dimension_numbers = #tpu.dot_dimension_numbers<[1], [0], [0], [1], [0, 0, 1, 1], [], []>} : vector<48x8xf32>, vector<8x256xf32>, vector<48x256xf32> -> vector<48x256xf32>
    %8 = vector.extract_strided_slice %7 {offsets = [0, 0], sizes = [16, 256], strides = [1, 1]} : vector<48x256xf32> to vector<16x256xf32>
    %9 = vector.extract_strided_slice %7 {offsets = [16, 0], sizes = [16, 256], strides = [1, 1]} : vector<48x256xf32> to vector<16x256xf32>
    %10 = vector.extract_strided_slice %7 {offsets = [32, 0], sizes = [16, 256], strides = [1, 1]} : vector<48x256xf32> to vector<16x256xf32>
    %11 = arith.mulf %8, %8 : vector<16x256xf32>
    %cst_9 = arith.constant dense<0.000000e+00> : vector<16xf32>
    %12 = vector.multi_reduction <add>, %11, %cst_9 [1] : vector<16x256xf32> to vector<16xf32>
    %13 = vector.shape_cast %12 : vector<16xf32> to vector<16x1xf32>
    %cst_10 = arith.constant 1.000000e-24 : f32
    %14 = vector.broadcast %cst_10 : f32 to vector<16x1xf32>
    %15 = arith.maximumf %13, %14 : vector<16x1xf32>
    %16 = math.rsqrt %15 : vector<16x1xf32>
    %17 = vector.broadcast %16 : vector<16x1xf32> to vector<16x256xf32>
    %18 = arith.mulf %8, %17 : vector<16x256xf32>
    %19 = arith.mulf %9, %9 : vector<16x256xf32>
    %cst_11 = arith.constant dense<0.000000e+00> : vector<16xf32>
    %20 = vector.multi_reduction <add>, %19, %cst_11 [1] : vector<16x256xf32> to vector<16xf32>
    %21 = vector.shape_cast %20 : vector<16xf32> to vector<16x1xf32>
    %cst_12 = arith.constant 1.000000e-24 : f32
    %22 = vector.broadcast %cst_12 : f32 to vector<16x1xf32>
    %23 = arith.maximumf %21, %22 : vector<16x1xf32>
    %24 = math.rsqrt %23 : vector<16x1xf32>
    %25 = vector.broadcast %24 : vector<16x1xf32> to vector<16x256xf32>
    %26 = arith.mulf %9, %25 : vector<16x256xf32>
    %c0_13 = arith.constant 0 : index
    %c0_14 = arith.constant 0 : index
    %27 = vector.load %arg3[%c0_13, %c0_14] : memref<16x1xf32, #tpu.memory_space<vmem>>, vector<16x1xf32>
    %28 = vector.broadcast %27 : vector<16x1xf32> to vector<16x256xf32>
    %29 = arith.mulf %26, %28 : vector<16x256xf32>
    %cst_15 = arith.constant dense<0.000000e+00> : vector<16x16xf32>
    %30 = tpu.matmul %29, %18, %cst_15 {dimension_numbers = #tpu.dot_dimension_numbers<[1], [1], [0], [0], [0, 0, 1, 0], [], []>} : vector<16x256xf32>, vector<16x256xf32>, vector<16x16xf32> -> vector<16x16xf32>
    %c0_16 = arith.constant 0 : index
    %c0_17 = arith.constant 0 : index
    %31 = vector.load %arg4[%c0_16, %c0_17] : memref<16x16xf32, #tpu.memory_space<vmem>>, vector<16x16xf32>
    %32 = arith.addf %30, %31 : vector<16x16xf32>
    %cst_18 = arith.constant dense<0xFF800000> : vector<16xf32>
    %33 = vector.multi_reduction <maximumf>, %32, %cst_18 [1] : vector<16x16xf32> to vector<16xf32>
    %34 = vector.shape_cast %33 : vector<16xf32> to vector<16x1xf32>
    %35 = vector.broadcast %34 : vector<16x1xf32> to vector<16x16xf32>
    %36 = arith.subf %32, %35 : vector<16x16xf32>
    %37 = math.exp %36 : vector<16x16xf32>
    %cst_19 = arith.constant dense<0.000000e+00> : vector<16xf32>
    %38 = vector.multi_reduction <add>, %37, %cst_19 [1] : vector<16x16xf32> to vector<16xf32>
    %39 = vector.shape_cast %38 : vector<16xf32> to vector<16x1xf32>
    %40 = tpu.reciprocal %39 {approx = true} : vector<16x1xf32> -> vector<16x1xf32>
    %41 = vector.broadcast %40 : vector<16x1xf32> to vector<16x16xf32>
    %42 = arith.mulf %37, %41 : vector<16x16xf32>
    %cst_20 = arith.constant dense<0.000000e+00> : vector<16x256xf32>
    %43 = tpu.matmul %42, %10, %cst_20 {dimension_numbers = #tpu.dot_dimension_numbers<[1], [0], [0], [1], [0, 0, 1, 1], [], []>} : vector<16x16xf32>, vector<16x256xf32>, vector<16x256xf32> -> vector<16x256xf32>
    %c0_21 = arith.constant 0 : index
    %c0_22 = arith.constant 0 : index
    %44 = vector.load %arg5[%c0_21, %c0_22] : memref<8x16xf32, #tpu.memory_space<vmem>>, vector<8x16xf32>
    %cst_23 = arith.constant dense<0.000000e+00> : vector<8x256xf32>
    %45 = tpu.matmul %44, %43, %cst_23 {dimension_numbers = #tpu.dot_dimension_numbers<[1], [0], [0], [1], [0, 0, 1, 1], [], []>} : vector<8x16xf32>, vector<16x256xf32>, vector<8x256xf32> -> vector<8x256xf32>
    %c0_24 = arith.constant 0 : index
    %c0_25 = arith.constant 0 : index
    %46 = vector.load %arg6[%c0_24, %c0_25] : memref<8x1xf32, #tpu.memory_space<vmem>>, vector<8x1xf32>
    %47 = vector.broadcast %46 : vector<8x1xf32> to vector<8x256xf32>
    %48 = arith.addf %45, %47 : vector<8x256xf32>
    %c0_26 = arith.constant 0 : index
    %c0_27 = arith.constant 0 : index
    %49 = vector.load %arg7[%c0_26, %c0_27] : memref<8x9xf32, #tpu.memory_space<vmem>>, vector<8x9xf32>
    %c1_i32 = arith.constant 1 : i32
    %50 = tpu.dynamic_rotate %1 by %c1_i32 dim 1 : vector<8x256xf32>, i32 -> vector<8x256xf32>
    %51 = vector.broadcast %2 : vector<1x256xf32> to vector<8x256xf32>
    %52 = arith.mulf %50, %51 : vector<8x256xf32>
    %c255_i32 = arith.constant 255 : i32
    %53 = tpu.dynamic_rotate %1 by %c255_i32 dim 1 : vector<8x256xf32>, i32 -> vector<8x256xf32>
    %54 = vector.broadcast %3 : vector<1x256xf32> to vector<8x256xf32>
    %55 = arith.mulf %53, %54 : vector<8x256xf32>
    %56 = vector.extract_strided_slice %49 {offsets = [0, 0], sizes = [8, 1], strides = [1, 1]} : vector<8x9xf32> to vector<8x1xf32>
    %57 = vector.broadcast %56 : vector<8x1xf32> to vector<8x256xf32>
    %58 = arith.mulf %52, %57 : vector<8x256xf32>
    %59 = vector.extract_strided_slice %49 {offsets = [0, 1], sizes = [8, 1], strides = [1, 1]} : vector<8x9xf32> to vector<8x1xf32>
    %60 = vector.broadcast %59 : vector<8x1xf32> to vector<8x256xf32>
    %61 = arith.mulf %1, %60 : vector<8x256xf32>
    %62 = arith.addf %58, %61 : vector<8x256xf32>
    %63 = vector.extract_strided_slice %49 {offsets = [0, 2], sizes = [8, 1], strides = [1, 1]} : vector<8x9xf32> to vector<8x1xf32>
    %64 = vector.broadcast %63 : vector<8x1xf32> to vector<8x256xf32>
    %65 = arith.mulf %55, %64 : vector<8x256xf32>
    %66 = arith.addf %62, %65 : vector<8x256xf32>
    %67 = vector.extract_strided_slice %49 {offsets = [0, 3], sizes = [8, 1], strides = [1, 1]} : vector<8x9xf32> to vector<8x1xf32>
    %68 = vector.broadcast %67 : vector<8x1xf32> to vector<8x256xf32>
    %69 = arith.mulf %52, %68 : vector<8x256xf32>
    %70 = vector.extract_strided_slice %49 {offsets = [0, 4], sizes = [8, 1], strides = [1, 1]} : vector<8x9xf32> to vector<8x1xf32>
    %71 = vector.broadcast %70 : vector<8x1xf32> to vector<8x256xf32>
    %72 = arith.mulf %1, %71 : vector<8x256xf32>
    %73 = arith.addf %69, %72 : vector<8x256xf32>
    %74 = vector.extract_strided_slice %49 {offsets = [0, 5], sizes = [8, 1], strides = [1, 1]} : vector<8x9xf32> to vector<8x1xf32>
    %75 = vector.broadcast %74 : vector<8x1xf32> to vector<8x256xf32>
    %76 = arith.mulf %55, %75 : vector<8x256xf32>
    %77 = arith.addf %73, %76 : vector<8x256xf32>
    %78 = vector.extract_strided_slice %49 {offsets = [0, 6], sizes = [8, 1], strides = [1, 1]} : vector<8x9xf32> to vector<8x1xf32>
    %79 = vector.broadcast %78 : vector<8x1xf32> to vector<8x256xf32>
    %80 = arith.mulf %52, %79 : vector<8x256xf32>
    %81 = vector.extract_strided_slice %49 {offsets = [0, 7], sizes = [8, 1], strides = [1, 1]} : vector<8x9xf32> to vector<8x1xf32>
    %82 = vector.broadcast %81 : vector<8x1xf32> to vector<8x256xf32>
    %83 = arith.mulf %1, %82 : vector<8x256xf32>
    %84 = arith.addf %80, %83 : vector<8x256xf32>
    %85 = vector.extract_strided_slice %49 {offsets = [0, 8], sizes = [8, 1], strides = [1, 1]} : vector<8x9xf32> to vector<8x1xf32>
    %86 = vector.broadcast %85 : vector<8x1xf32> to vector<8x256xf32>
    %87 = arith.mulf %55, %86 : vector<8x256xf32>
    %88 = arith.addf %84, %87 : vector<8x256xf32>
    %c16_i32 = arith.constant 16 : i32
    %89 = tpu.dynamic_rotate %66 by %c16_i32 dim 1 : vector<8x256xf32>, i32 -> vector<8x256xf32>
    %90 = vector.broadcast %4 : vector<1x256xf32> to vector<8x256xf32>
    %91 = arith.mulf %89, %90 : vector<8x256xf32>
    %92 = arith.addf %91, %77 : vector<8x256xf32>
    %c240_i32 = arith.constant 240 : i32
    %93 = tpu.dynamic_rotate %88 by %c240_i32 dim 1 : vector<8x256xf32>, i32 -> vector<8x256xf32>
    %94 = vector.broadcast %5 : vector<1x256xf32> to vector<8x256xf32>
    %95 = arith.mulf %93, %94 : vector<8x256xf32>
    %96 = arith.addf %92, %95 : vector<8x256xf32>
    %97 = arith.addf %48, %96 : vector<8x256xf32>
    %98 = arith.addf %97, %1 : vector<8x256xf32>
    %c0_i32 = arith.constant 0 : i32
    %c2_i32 = arith.constant 2 : i32
    %99 = arith.addi %c0_i32, %c2_i32 : i32
    %c1_i32_28 = arith.constant 1 : i32
    %100 = scf.for %arg13 = %c0_i32 to %99 step %c1_i32_28 iter_args(%arg14 = %98) -> (vector<8x256xf32>)  : i32 {
      %104 = arith.index_cast %arg13 : i32 to index
      %c0_33 = arith.constant 0 : index
      %c0_34 = arith.constant 0 : index
      %105 = vector.load %arg9[%104, %c0_33, %c0_34] : memref<2x16x8xf32, #tpu.memory_space<vmem>>, vector<1x16x8xf32>
      %106 = vector.shape_cast %105 : vector<1x16x8xf32> to vector<16x8xf32>
      %cst_35 = arith.constant dense<0.000000e+00> : vector<16x256xf32>
      %107 = tpu.matmul %106, %98, %cst_35 {dimension_numbers = #tpu.dot_dimension_numbers<[1], [0], [0], [1], [0, 0, 1, 1], [], []>} : vector<16x8xf32>, vector<8x256xf32>, vector<16x256xf32> -> vector<16x256xf32>
      %108 = math.absf %107 : vector<16x256xf32>
      %cst_36 = arith.constant 0.707106769 : f32
      %109 = vector.broadcast %cst_36 : f32 to vector<16x256xf32>
      %110 = arith.mulf %108, %109 : vector<16x256xf32>
      %cst_37 = arith.constant 0.327591091 : f32
      %111 = vector.broadcast %cst_37 : f32 to vector<16x256xf32>
      %112 = arith.mulf %111, %110 : vector<16x256xf32>
      %cst_38 = arith.constant 1.000000e+00 : f32
      %113 = vector.broadcast %cst_38 : f32 to vector<16x256xf32>
      %114 = arith.addf %113, %112 : vector<16x256xf32>
      %cst_39 = arith.constant 1.000000e+00 : f32
      %115 = vector.broadcast %cst_39 : f32 to vector<16x256xf32>
      %116 = arith.divf %115, %114 : vector<16x256xf32>
      %cst_40 = arith.constant 1.06140542 : f32
      %117 = vector.broadcast %cst_40 : f32 to vector<16x256xf32>
      %118 = arith.mulf %117, %116 : vector<16x256xf32>
      %cst_41 = arith.constant 1.45315206 : f32
      %119 = vector.broadcast %cst_41 : f32 to vector<16x256xf32>
      %120 = arith.subf %118, %119 : vector<16x256xf32>
      %121 = arith.mulf %120, %116 : vector<16x256xf32>
      %cst_42 = arith.constant 1.42141378 : f32
      %122 = vector.broadcast %cst_42 : f32 to vector<16x256xf32>
      %123 = arith.addf %121, %122 : vector<16x256xf32>
      %124 = arith.mulf %123, %116 : vector<16x256xf32>
      %cst_43 = arith.constant 0.284496725 : f32
      %125 = vector.broadcast %cst_43 : f32 to vector<16x256xf32>
      %126 = arith.subf %124, %125 : vector<16x256xf32>
      %127 = arith.mulf %126, %116 : vector<16x256xf32>
      %cst_44 = arith.constant 0.254829586 : f32
      %128 = vector.broadcast %cst_44 : f32 to vector<16x256xf32>
      %129 = arith.addf %127, %128 : vector<16x256xf32>
      %130 = arith.mulf %129, %116 : vector<16x256xf32>
      %cst_45 = arith.constant 0.000000e+00 : f32
      %131 = vector.broadcast %cst_45 : f32 to vector<16x256xf32>
      %132 = arith.maximumf %107, %131 : vector<16x256xf32>
      %cst_46 = arith.constant 0.707106769 : f32
      %133 = vector.broadcast %cst_46 : f32 to vector<16x256xf32>
      %134 = arith.mulf %133, %110 : vector<16x256xf32>
      %135 = arith.mulf %134, %130 : vector<16x256xf32>
      %cst_47 = arith.constant 0.000000e+00 : f32
      %136 = vector.broadcast %cst_47 : f32 to vector<16x256xf32>
      %137 = arith.subf %136, %110 : vector<16x256xf32>
      %138 = arith.mulf %137, %110 : vector<16x256xf32>
      %139 = math.exp %138 : vector<16x256xf32>
      %140 = arith.mulf %135, %139 : vector<16x256xf32>
      %141 = arith.subf %132, %140 : vector<16x256xf32>
      %142 = arith.index_cast %arg13 : i32 to index
      %c0_48 = arith.constant 0 : index
      %c0_49 = arith.constant 0 : index
      %143 = vector.load %arg10[%142, %c0_48, %c0_49] : memref<2x16x9xf32, #tpu.memory_space<vmem>>, vector<1x16x9xf32>
      %144 = vector.shape_cast %143 : vector<1x16x9xf32> to vector<16x9xf32>
      %c1_i32_50 = arith.constant 1 : i32
      %145 = tpu.dynamic_rotate %141 by %c1_i32_50 dim 1 : vector<16x256xf32>, i32 -> vector<16x256xf32>
      %146 = vector.broadcast %2 : vector<1x256xf32> to vector<16x256xf32>
      %147 = arith.mulf %145, %146 : vector<16x256xf32>
      %c255_i32_51 = arith.constant 255 : i32
      %148 = tpu.dynamic_rotate %141 by %c255_i32_51 dim 1 : vector<16x256xf32>, i32 -> vector<16x256xf32>
      %149 = vector.broadcast %3 : vector<1x256xf32> to vector<16x256xf32>
      %150 = arith.mulf %148, %149 : vector<16x256xf32>
      %151 = vector.extract_strided_slice %144 {offsets = [0, 0], sizes = [16, 1], strides = [1, 1]} : vector<16x9xf32> to vector<16x1xf32>
      %152 = vector.broadcast %151 : vector<16x1xf32> to vector<16x256xf32>
      %153 = arith.mulf %147, %152 : vector<16x256xf32>
      %154 = vector.extract_strided_slice %144 {offsets = [0, 1], sizes = [16, 1], strides = [1, 1]} : vector<16x9xf32> to vector<16x1xf32>
      %155 = vector.broadcast %154 : vector<16x1xf32> to vector<16x256xf32>
      %156 = arith.mulf %141, %155 : vector<16x256xf32>
      %157 = arith.addf %153, %156 : vector<16x256xf32>
      %158 = vector.extract_strided_slice %144 {offsets = [0, 2], sizes = [16, 1], strides = [1, 1]} : vector<16x9xf32> to vector<16x1xf32>
      %159 = vector.broadcast %158 : vector<16x1xf32> to vector<16x256xf32>
      %160 = arith.mulf %150, %159 : vector<16x256xf32>
      %161 = arith.addf %157, %160 : vector<16x256xf32>
      %162 = vector.extract_strided_slice %144 {offsets = [0, 3], sizes = [16, 1], strides = [1, 1]} : vector<16x9xf32> to vector<16x1xf32>
      %163 = vector.broadcast %162 : vector<16x1xf32> to vector<16x256xf32>
      %164 = arith.mulf %147, %163 : vector<16x256xf32>
      %165 = vector.extract_strided_slice %144 {offsets = [0, 4], sizes = [16, 1], strides = [1, 1]} : vector<16x9xf32> to vector<16x1xf32>
      %166 = vector.broadcast %165 : vector<16x1xf32> to vector<16x256xf32>
      %167 = arith.mulf %141, %166 : vector<16x256xf32>
      %168 = arith.addf %164, %167 : vector<16x256xf32>
      %169 = vector.extract_strided_slice %144 {offsets = [0, 5], sizes = [16, 1], strides = [1, 1]} : vector<16x9xf32> to vector<16x1xf32>
      %170 = vector.broadcast %169 : vector<16x1xf32> to vector<16x256xf32>
      %171 = arith.mulf %150, %170 : vector<16x256xf32>
      %172 = arith.addf %168, %171 : vector<16x256xf32>
      %173 = vector.extract_strided_slice %144 {offsets = [0, 6], sizes = [16, 1], strides = [1, 1]} : vector<16x9xf32> to vector<16x1xf32>
      %174 = vector.broadcast %173 : vector<16x1xf32> to vector<16x256xf32>
      %175 = arith.mulf %147, %174 : vector<16x256xf32>
      %176 = vector.extract_strided_slice %144 {offsets = [0, 7], sizes = [16, 1], strides = [1, 1]} : vector<16x9xf32> to vector<16x1xf32>
      %177 = vector.broadcast %176 : vector<16x1xf32> to vector<16x256xf32>
      %178 = arith.mulf %141, %177 : vector<16x256xf32>
      %179 = arith.addf %175, %178 : vector<16x256xf32>
      %180 = vector.extract_strided_slice %144 {offsets = [0, 8], sizes = [16, 1], strides = [1, 1]} : vector<16x9xf32> to vector<16x1xf32>
      %181 = vector.broadcast %180 : vector<16x1xf32> to vector<16x256xf32>
      %182 = arith.mulf %150, %181 : vector<16x256xf32>
      %183 = arith.addf %179, %182 : vector<16x256xf32>
      %c16_i32_52 = arith.constant 16 : i32
      %184 = tpu.dynamic_rotate %161 by %c16_i32_52 dim 1 : vector<16x256xf32>, i32 -> vector<16x256xf32>
      %185 = vector.broadcast %4 : vector<1x256xf32> to vector<16x256xf32>
      %186 = arith.mulf %184, %185 : vector<16x256xf32>
      %187 = arith.addf %186, %172 : vector<16x256xf32>
      %c240_i32_53 = arith.constant 240 : i32
      %188 = tpu.dynamic_rotate %183 by %c240_i32_53 dim 1 : vector<16x256xf32>, i32 -> vector<16x256xf32>
      %189 = vector.broadcast %5 : vector<1x256xf32> to vector<16x256xf32>
      %190 = arith.mulf %188, %189 : vector<16x256xf32>
      %191 = arith.addf %187, %190 : vector<16x256xf32>
      %192 = math.absf %191 : vector<16x256xf32>
      %cst_54 = arith.constant 0.707106769 : f32
      %193 = vector.broadcast %cst_54 : f32 to vector<16x256xf32>
      %194 = arith.mulf %192, %193 : vector<16x256xf32>
      %cst_55 = arith.constant 0.327591091 : f32
      %195 = vector.broadcast %cst_55 : f32 to vector<16x256xf32>
      %196 = arith.mulf %195, %194 : vector<16x256xf32>
      %cst_56 = arith.constant 1.000000e+00 : f32
      %197 = vector.broadcast %cst_56 : f32 to vector<16x256xf32>
      %198 = arith.addf %197, %196 : vector<16x256xf32>
      %cst_57 = arith.constant 1.000000e+00 : f32
      %199 = vector.broadcast %cst_57 : f32 to vector<16x256xf32>
      %200 = arith.divf %199, %198 : vector<16x256xf32>
      %cst_58 = arith.constant 1.06140542 : f32
      %201 = vector.broadcast %cst_58 : f32 to vector<16x256xf32>
      %202 = arith.mulf %201, %200 : vector<16x256xf32>
      %cst_59 = arith.constant 1.45315206 : f32
      %203 = vector.broadcast %cst_59 : f32 to vector<16x256xf32>
      %204 = arith.subf %202, %203 : vector<16x256xf32>
      %205 = arith.mulf %204, %200 : vector<16x256xf32>
      %cst_60 = arith.constant 1.42141378 : f32
      %206 = vector.broadcast %cst_60 : f32 to vector<16x256xf32>
      %207 = arith.addf %205, %206 : vector<16x256xf32>
      %208 = arith.mulf %207, %200 : vector<16x256xf32>
      %cst_61 = arith.constant 0.284496725 : f32
      %209 = vector.broadcast %cst_61 : f32 to vector<16x256xf32>
      %210 = arith.subf %208, %209 : vector<16x256xf32>
      %211 = arith.mulf %210, %200 : vector<16x256xf32>
      %cst_62 = arith.constant 0.254829586 : f32
      %212 = vector.broadcast %cst_62 : f32 to vector<16x256xf32>
      %213 = arith.addf %211, %212 : vector<16x256xf32>
      %214 = arith.mulf %213, %200 : vector<16x256xf32>
      %cst_63 = arith.constant 0.000000e+00 : f32
      %215 = vector.broadcast %cst_63 : f32 to vector<16x256xf32>
      %216 = arith.maximumf %191, %215 : vector<16x256xf32>
      %cst_64 = arith.constant 0.707106769 : f32
      %217 = vector.broadcast %cst_64 : f32 to vector<16x256xf32>
      %218 = arith.mulf %217, %194 : vector<16x256xf32>
      %219 = arith.mulf %218, %214 : vector<16x256xf32>
      %cst_65 = arith.constant 0.000000e+00 : f32
      %220 = vector.broadcast %cst_65 : f32 to vector<16x256xf32>
      %221 = arith.subf %220, %194 : vector<16x256xf32>
      %222 = arith.mulf %221, %194 : vector<16x256xf32>
      %223 = math.exp %222 : vector<16x256xf32>
      %224 = arith.mulf %219, %223 : vector<16x256xf32>
      %225 = arith.subf %216, %224 : vector<16x256xf32>
      %226 = arith.index_cast %arg13 : i32 to index
      %c0_66 = arith.constant 0 : index
      %c0_67 = arith.constant 0 : index
      %227 = vector.load %arg11[%226, %c0_66, %c0_67] : memref<2x8x16xf32, #tpu.memory_space<vmem>>, vector<1x8x16xf32>
      %228 = vector.shape_cast %227 : vector<1x8x16xf32> to vector<8x16xf32>
      %cst_68 = arith.constant dense<0.000000e+00> : vector<8x256xf32>
      %229 = tpu.matmul %228, %225, %cst_68 {dimension_numbers = #tpu.dot_dimension_numbers<[1], [0], [0], [1], [0, 0, 1, 1], [], []>} : vector<8x16xf32>, vector<16x256xf32>, vector<8x256xf32> -> vector<8x256xf32>
      %230 = arith.addf %arg14, %229 : vector<8x256xf32>
      scf.yield %230 : vector<8x256xf32>
    }
    %c2_i32_29 = arith.constant 2 : i32
    %c0_30 = arith.constant 0 : index
    %c0_31 = arith.constant 0 : index
    %c0_32 = arith.constant 0 : index
    %101 = vector.load %arg12[%c0_30, %c0_31, %c0_32] : memref<1x8x256xf32, #tpu.memory_space<vmem>>, vector<1x8x256xf32>
    %102 = vector.shape_cast %101 : vector<1x8x256xf32> to vector<8x256xf32>
    %103 = vector.shape_cast %100 : vector<8x256xf32> to vector<1x8x256xf32>
    tpu.vector_store %arg12[%c0_30, %c0_31, %c0_32], %103 {strides = array<i32>} : memref<1x8x256xf32, #tpu.memory_space<vmem>>, vector<1x8x256xf32>,
    return
  }
  func.func @transform_0(%arg0: i32) -> (i32, i32, i32) {
    %c0_i32 = arith.constant 0 : i32
    %c0_i32_0 = arith.constant 0 : i32
    %c0_i32_1 = arith.constant 0 : i32
    return %arg0, %c0_i32, %c0_i32_0 : i32, i32, i32
  }
  func.func @transform_1(%arg0: i32) -> (i32, i32) {
    %c0_i32 = arith.constant 0 : i32
    %c0_i32_0 = arith.constant 0 : i32
    %c0_i32_1 = arith.constant 0 : i32
    return %c0_i32, %c0_i32_0 : i32, i32
  }
  func.func @transform_2(%arg0: i32) -> (i32, i32) {
    %c0_i32 = arith.constant 0 : i32
    %c0_i32_0 = arith.constant 0 : i32
    %c0_i32_1 = arith.constant 0 : i32
    return %c0_i32, %c0_i32_0 : i32, i32
  }
  func.func @transform_3(%arg0: i32) -> (i32, i32) {
    %c0_i32 = arith.constant 0 : i32
    %c0_i32_0 = arith.constant 0 : i32
    %c0_i32_1 = arith.constant 0 : i32
    return %c0_i32, %c0_i32_0 : i32, i32
  }
  func.func @transform_4(%arg0: i32) -> (i32, i32) {
    %c0_i32 = arith.constant 0 : i32
    %c0_i32_0 = arith.constant 0 : i32
    %c0_i32_1 = arith.constant 0 : i32
    return %c0_i32, %c0_i32_0 : i32, i32
  }
  func.func @transform_5(%arg0: i32) -> (i32, i32) {
    %c0_i32 = arith.constant 0 : i32
    %c0_i32_0 = arith.constant 0 : i32
    %c0_i32_1 = arith.constant 0 : i32
    return %c0_i32, %c0_i32_0 : i32, i32
  }
  func.func @transform_6(%arg0: i32) -> (i32, i32) {
    %c0_i32 = arith.constant 0 : i32
    %c0_i32_0 = arith.constant 0 : i32
    %c0_i32_1 = arith.constant 0 : i32
    return %c0_i32, %c0_i32_0 : i32, i32
  }
  func.func @transform_7(%arg0: i32) -> (i32, i32) {
    %c0_i32 = arith.constant 0 : i32
    %c0_i32_0 = arith.constant 0 : i32
    %c0_i32_1 = arith.constant 0 : i32
    return %c0_i32, %c0_i32_0 : i32, i32
  }
  func.func @transform_8(%arg0: i32) -> (i32, i32, i32) {
    %c0_i32 = arith.constant 0 : i32
    %c0_i32_0 = arith.constant 0 : i32
    %c0_i32_1 = arith.constant 0 : i32
    %c0_i32_2 = arith.constant 0 : i32
    return %c0_i32, %c0_i32_0, %c0_i32_1 : i32, i32, i32
  }
  func.func @transform_9(%arg0: i32) -> (i32, i32, i32) {
    %c0_i32 = arith.constant 0 : i32
    %c0_i32_0 = arith.constant 0 : i32
    %c0_i32_1 = arith.constant 0 : i32
    %c0_i32_2 = arith.constant 0 : i32
    return %c0_i32, %c0_i32_0, %c0_i32_1 : i32, i32, i32
  }
  func.func @transform_10(%arg0: i32) -> (i32, i32, i32) {
    %c0_i32 = arith.constant 0 : i32
    %c0_i32_0 = arith.constant 0 : i32
    %c0_i32_1 = arith.constant 0 : i32
    %c0_i32_2 = arith.constant 0 : i32
    return %c0_i32, %c0_i32_0, %c0_i32_1 : i32, i32, i32
  }
  func.func @transform_11(%arg0: i32) -> (i32, i32, i32) {
    %c0_i32 = arith.constant 0 : i32
    %c0_i32_0 = arith.constant 0 : i32
    %c0_i32_1 = arith.constant 0 : i32
    return %arg0, %c0_i32, %c0_i32_0 : i32, i32, i32
  }
}

</mosaic_0001>

<llo_original>
// kernel: transformer_forward.1
$region0: #{transformer_forward.1}
  #allocation0 [shape = 'u32[]', space=smem, size = 0x4, offset = 0x4, fixed_abs, tag = 'smem constant byte address 0x4 - core index']
  #allocation1 [shape = 'u32[144,128]{1,0:T(1,128)}', space=vmem, size = 0x12000, scoped, tag = 'internal scratch']
  %s0 = inlined_call_operand.vmem [shape: f32[2,8,256], index: 0, kind: input, shape index: {}]
  %s1 = inlined_call_operand.vmem [shape: f32[48,8], index: 1, kind: input, shape index: {}]
  %s2 = inlined_call_operand.vmem [shape: f32[16,1], index: 2, kind: input, shape index: {}]
  %s3 = inlined_call_operand.vmem [shape: f32[16,16], index: 3, kind: input, shape index: {}]
  %s4 = inlined_call_operand.vmem [shape: f32[8,16], index: 4, kind: input, shape index: {}]
  %s5 = inlined_call_operand.vmem [shape: f32[8,1], index: 5, kind: input, shape index: {}]
  %s6 = inlined_call_operand.vmem [shape: f32[8,9], index: 6, kind: input, shape index: {}]
  %s7 = inlined_call_operand.vmem [shape: f32[4,256], index: 7, kind: input, shape index: {}]
  %s8 = inlined_call_operand.vmem [shape: f32[2,16,8], index: 8, kind: input, shape index: {}]
  %s9 = inlined_call_operand.vmem [shape: f32[2,16,9], index: 9, kind: input, shape index: {}]
  %s10 = inlined_call_operand.vmem [shape: f32[2,8,16], index: 10, kind: input, shape index: {}]
  %s11 = inlined_call_operand.vmem [shape: f32[2,8,256], index: 11, kind: output, shape index: {}]
  %s12 = sld [smem:[#allocation0]]
  $region84: #{transformer_forward.1} parent=0
    _
  %s14 = ssub.s32 1, %s12
  %s15 = scalar_select 0, %s14, %s12
  loop: start=0, step=1, limit=4
  $region2: #{transformer_forward.1} parent=0 // loop_pre_header
    _
  $region3: #{transformer_forward.1} parent=0 // loop_header
    %s17 = sphi 0, %s21
    %p18 = scmp.ge.s32.totalorder %s17, 4
    %s27 = sphi 0, %s29
    %s30 = sphi 0, %s27
    %s31 = sphi 0, %s30
    %s47 = sphi 0, %s31
    %s51 = sphi 0, %s51
    %s53 = sphi 0, %s51
    %s54 = sphi 0, %s53
    %s68 = sphi 0, %s54
    %s72 = sphi 0, %s72
    %s74 = sphi 0, %s72
    %s75 = sphi 0, %s74
    %s89 = sphi 0, %s75
    %s93 = sphi 0, %s93
    %s95 = sphi 0, %s93
    %s96 = sphi 0, %s95
    %s110 = sphi 0, %s96
    %s114 = sphi 0, %s114
    %s116 = sphi 0, %s114
    %s117 = sphi 0, %s116
    %s131 = sphi 0, %s117
    %s135 = sphi 0, %s135
    %s137 = sphi 0, %s135
    %s138 = sphi 0, %s137
    %s152 = sphi 0, %s138
    %s156 = sphi 0, %s156
    %s158 = sphi 0, %s156
    %s159 = sphi 0, %s158
    %s173 = sphi 0, %s159
    %s177 = sphi 0, %s177
    %s179 = sphi 0, %s177
    %s180 = sphi 0, %s179
    %s194 = sphi 0, %s180
    %s198 = sphi 0, %s198
    %s200 = sphi 0, %s198
    %s201 = sphi 0, %s200
    %s215 = sphi 0, %s201
    %s219 = sphi 0, %s219
    %s221 = sphi 0, %s219
    %s222 = sphi 0, %s221
    %s236 = sphi 0, %s222
    %s240 = sphi 0, %s240
    %s242 = sphi 0, %s240
    %s243 = sphi 0, %s242
    %s257 = sphi 0, %s243
    %s263 = sphi 0, %s265
    %s266 = sphi 0, %s263
    %s267 = sphi 0, %s266
    %s283 = sphi 0, %s267
  $region4: #{transformer_forward.1} parent=0 // loop_header_branch
    %20 = sbr.rel (%p18) target = $region8
  $region5: #{transformer_forward.1} parent=0 // loop_body
    %s22 = ssub.s32 %s17, 1
    %s23 = ssub.s32 %s17, 2
    %s24 = sadd.s32 %s17, 1
    %s25 = ssub.s32 %s17, %s24
    %p26 = scmp.eq.s32.totalorder %s25, 0
    %s28 = sadd.s32 %s27, 1
    %s29 = scalar_select %p26, %s27, %s28
    %p32 = pneg %p26
    %p33 = scmp.eq.s32.totalorder %s17, 1
    %p34 = por %p32, %p33
    %p35 = scmp.ne.s32.totalorder %s27, %s30
    %p36 = scmp.eq.s32.totalorder %s17, 0
    %p37 = por %p35, %p36
    %p38 = scmp.ne.s32.totalorder %s27, %s30
    %p39 = scmp.eq.s32.totalorder %s22, 1
    %p40 = por %p38, %p39
    %p41 = scmp.ne.s32.totalorder %s30, %s31
    %p42 = scmp.eq.s32.totalorder %s22, 0
    %p43 = por %p41, %p42
    %p44 = scmp.ne.s32.totalorder %s30, %s31
    %p45 = scmp.eq.s32.totalorder %s23, 1
    %p46 = por %p44, %p45
    %p48 = scmp.ne.s32.totalorder %s31, %s47
    %p49 = scmp.eq.s32.totalorder %s23, 0
    %p50 = por %p48, %p49
    %s52 = sadd.s32 %s51, 1
    %p55 = scmp.eq.s32.totalorder %s17, 1
    %p56 = scmp.ne.s32.totalorder %s51, %s53
    %p57 = scmp.eq.s32.totalorder %s17, 0
    %p58 = por %p56, %p57
    %p59 = scmp.ne.s32.totalorder %s51, %s53
    %p60 = scmp.eq.s32.totalorder %s22, 1
    %p61 = por %p59, %p60
    %p62 = scmp.ne.s32.totalorder %s53, %s54
    %p63 = scmp.eq.s32.totalorder %s22, 0
    %p64 = por %p62, %p63
    %p65 = scmp.ne.s32.totalorder %s53, %s54
    %p66 = scmp.eq.s32.totalorder %s23, 1
    %p67 = por %p65, %p66
    %p69 = scmp.ne.s32.totalorder %s54, %s68
    %p70 = scmp.eq.s32.totalorder %s23, 0
    %p71 = por %p69, %p70
    %s73 = sadd.s32 %s72, 1
    %p76 = scmp.eq.s32.totalorder %s17, 1
    %p77 = scmp.ne.s32.totalorder %s72, %s74
    %p78 = scmp.eq.s32.totalorder %s17, 0
    %p79 = por %p77, %p78
    %p80 = scmp.ne.s32.totalorder %s72, %s74
    %p81 = scmp.eq.s32.totalorder %s22, 1
    %p82 = por %p80, %p81
    %p83 = scmp.ne.s32.totalorder %s74, %s75
    %p84 = scmp.eq.s32.totalorder %s22, 0
    %p85 = por %p83, %p84
    %p86 = scmp.ne.s32.totalorder %s74, %s75
    %p87 = scmp.eq.s32.totalorder %s23, 1
    %p88 = por %p86, %p87
    %p90 = scmp.ne.s32.totalorder %s75, %s89
    %p91 = scmp.eq.s32.totalorder %s23, 0
    %p92 = por %p90, %p91
    %s94 = sadd.s32 %s93, 1
    %p97 = scmp.eq.s32.totalorder %s17, 1
    %p98 = scmp.ne.s32.totalorder %s93, %s95
    %p99 = scmp.eq.s32.totalorder %s17, 0
    %p100 = por %p98, %p99
    %p101 = scmp.ne.s32.totalorder %s93, %s95
    %p102 = scmp.eq.s32.totalorder %s22, 1
    %p103 = por %p101, %p102
    %p104 = scmp.ne.s32.totalorder %s95, %s96
    %p105 = scmp.eq.s32.totalorder %s22, 0
    %p106 = por %p104, %p105
    %p107 = scmp.ne.s32.totalorder %s95, %s96
    %p108 = scmp.eq.s32.totalorder %s23, 1
    %p109 = por %p107, %p108
    %p111 = scmp.ne.s32.totalorder %s96, %s110
    %p112 = scmp.eq.s32.totalorder %s23, 0
    %p113 = por %p111, %p112
    %s115 = sadd.s32 %s114, 1
    %p118 = scmp.eq.s32.totalorder %s17, 1
    %p119 = scmp.ne.s32.totalorder %s114, %s116
    %p120 = scmp.eq.s32.totalorder %s17, 0
    %p121 = por %p119, %p120
    %p122 = scmp.ne.s32.totalorder %s114, %s116
    %p123 = scmp.eq.s32.totalorder %s22, 1
    %p124 = por %p122, %p123
    %p125 = scmp.ne.s32.totalorder %s116, %s117
    %p126 = scmp.eq.s32.totalorder %s22, 0
    %p127 = por %p125, %p126
    %p128 = scmp.ne.s32.totalorder %s116, %s117
    %p129 = scmp.eq.s32.totalorder %s23, 1
    %p130 = por %p128, %p129
    %p132 = scmp.ne.s32.totalorder %s117, %s131
    %p133 = scmp.eq.s32.totalorder %s23, 0
    %p134 = por %p132, %p133
    %s136 = sadd.s32 %s135, 1
    %p139 = scmp.eq.s32.totalorder %s17, 1
    %p140 = scmp.ne.s32.totalorder %s135, %s137
    %p141 = scmp.eq.s32.totalorder %s17, 0
    %p142 = por %p140, %p141
    %p143 = scmp.ne.s32.totalorder %s135, %s137
    %p144 = scmp.eq.s32.totalorder %s22, 1
    %p145 = por %p143, %p144
    %p146 = scmp.ne.s32.totalorder %s137, %s138
    %p147 = scmp.eq.s32.totalorder %s22, 0
    %p148 = por %p146, %p147
    %p149 = scmp.ne.s32.totalorder %s137, %s138
    %p150 = scmp.eq.s32.totalorder %s23, 1
    %p151 = por %p149, %p150
    %p153 = scmp.ne.s32.totalorder %s138, %s152
    %p154 = scmp.eq.s32.totalorder %s23, 0
    %p155 = por %p153, %p154
    %s157 = sadd.s32 %s156, 1
    %p160 = scmp.eq.s32.totalorder %s17, 1
    %p161 = scmp.ne.s32.totalorder %s156, %s158
    %p162 = scmp.eq.s32.totalorder %s17, 0
    %p163 = por %p161, %p162
    %p164 = scmp.ne.s32.totalorder %s156, %s158
    %p165 = scmp.eq.s32.totalorder %s22, 1
    %p166 = por %p164, %p165
    %p167 = scmp.ne.s32.totalorder %s158, %s159
    %p168 = scmp.eq.s32.totalorder %s22, 0
    %p169 = por %p167, %p168
    %p170 = scmp.ne.s32.totalorder %s158, %s159
    %p171 = scmp.eq.s32.totalorder %s23, 1
    %p172 = por %p170, %p171
    %p174 = scmp.ne.s32.totalorder %s159, %s173
    %p175 = scmp.eq.s32.totalorder %s23, 0
    %p176 = por %p174, %p175
    %s178 = sadd.s32 %s177, 1
    %p181 = scmp.eq.s32.totalorder %s17, 1
    %p182 = scmp.ne.s32.totalorder %s177, %s179
    %p183 = scmp.eq.s32.totalorder %s17, 0
    %p184 = por %p182, %p183
    %p185 = scmp.ne.s32.totalorder %s177, %s179
    %p186 = scmp.eq.s32.totalorder %s22, 1
    %p187 = por %p185, %p186
    %p188 = scmp.ne.s32.totalorder %s179, %s180
    %p189 = scmp.eq.s32.totalorder %s22, 0
    %p190 = por %p188, %p189
    %p191 = scmp.ne.s32.totalorder %s179, %s180
    %p192 = scmp.eq.s32.totalorder %s23, 1
    %p193 = por %p191, %p192
    %p195 = scmp.ne.s32.totalorder %s180, %s194
    %p196 = scmp.eq.s32.totalorder %s23, 0
    %p197 = por %p195, %p196
    %s199 = sadd.s32 %s198, 1
    %p202 = scmp.eq.s32.totalorder %s17, 1
    %p203 = scmp.ne.s32.totalorder %s198, %s200
    %p204 = scmp.eq.s32.totalorder %s17, 0
    %p205 = por %p203, %p204
    %p206 = scmp.ne.s32.totalorder %s198, %s200
    %p207 = scmp.eq.s32.totalorder %s22, 1
    %p208 = por %p206, %p207
    %p209 = scmp.ne.s32.totalorder %s200, %s201
    %p210 = scmp.eq.s32.totalorder %s22, 0
    %p211 = por %p209, %p210
    %p212 = scmp.ne.s32.totalorder %s200, %s201
    %p213 = scmp.eq.s32.totalorder %s23, 1
    %p214 = por %p212, %p213
    %p216 = scmp.ne.s32.totalorder %s201, %s215
    %p217 = scmp.eq.s32.totalorder %s23, 0
    %p218 = por %p216, %p217
    %s220 = sadd.s32 %s219, 1
    %p223 = scmp.eq.s32.totalorder %s17, 1
    %p224 = scmp.ne.s32.totalorder %s219, %s221
    %p225 = scmp.eq.s32.totalorder %s17, 0
    %p226 = por %p224, %p225
    %p227 = scmp.ne.s32.totalorder %s219, %s221
    %p228 = scmp.eq.s32.totalorder %s22, 1
    %p229 = por %p227, %p228
    %p230 = scmp.ne.s32.totalorder %s221, %s222
    %p231 = scmp.eq.s32.totalorder %s22, 0
    %p232 = por %p230, %p231
    %p233 = scmp.ne.s32.totalorder %s221, %s222
    %p234 = scmp.eq.s32.totalorder %s23, 1
    %p235 = por %p233, %p234
    %p237 = scmp.ne.s32.totalorder %s222, %s236
    %p238 = scmp.eq.s32.totalorder %s23, 0
    %p239 = por %p237, %p238
    %s241 = sadd.s32 %s240, 1
    %p244 = scmp.eq.s32.totalorder %s17, 1
    %p245 = scmp.ne.s32.totalorder %s240, %s242
    %p246 = scmp.eq.s32.totalorder %s17, 0
    %p247 = por %p245, %p246
    %p248 = scmp.ne.s32.totalorder %s240, %s242
    %p249 = scmp.eq.s32.totalorder %s22, 1
    %p250 = por %p248, %p249
    %p251 = scmp.ne.s32.totalorder %s242, %s243
    %p252 = scmp.eq.s32.totalorder %s22, 0
    %p253 = por %p251, %p252
    %p254 = scmp.ne.s32.totalorder %s242, %s243
    %p255 = scmp.eq.s32.totalorder %s23, 1
    %p256 = por %p254, %p255
    %p258 = scmp.ne.s32.totalorder %s243, %s257
    %p259 = scmp.eq.s32.totalorder %s23, 0
    %p260 = por %p258, %p259
    %s261 = ssub.s32 %s17, %s24
    %p262 = scmp.eq.s32.totalorder %s261, 0
    %s264 = sadd.s32 %s263, 1
    %s265 = scalar_select %p262, %s263, %s264
    %p268 = pneg %p262
    %p269 = scmp.eq.s32.totalorder %s17, 1
    %p270 = por %p268, %p269
    %p271 = scmp.ne.s32.totalorder %s263, %s266
    %p272 = scmp.eq.s32.totalorder %s17, 0
    %p273 = por %p271, %p272
    %p274 = scmp.ne.s32.totalorder %s263, %s266
    %p275 = scmp.eq.s32.totalorder %s22, 1
    %p276 = por %p274, %p275
    %p277 = scmp.ne.s32.totalorder %s266, %s267
    %p278 = scmp.eq.s32.totalorder %s22, 0
    %p279 = por %p277, %p278
    %p280 = scmp.ne.s32.totalorder %s266, %s267
    %p281 = scmp.eq.s32.totalorder %s23, 1
    %p282 = por %p280, %p281
    %p284 = scmp.ne.s32.totalorder %s267, %s283
    %p285 = scmp.eq.s32.totalorder %s23, 0
    %p286 = por %p284, %p285
    %p287 = scmp.le.s32.totalorder 1, %s17
    %p288 = scmp.lt.s32.totalorder %s17, 3
    %p289 = pnand %p287, %p288
    %p290 = pneg %p289
    // Predicated region
    $region9: #{transformer_forward.1} parent=5 // pred_check
      _
    $region10: #{transformer_forward.1} parent=5 // pred_check_branch
      %292 = sbr.rel (%p289) target = $region12
    $region11: #{transformer_forward.1} parent=5 // pred_region
      %s293 = ssub.s32 %s17, 1
      // Predicated region
      $region13: #{transformer_forward.1} parent=11 // pred_check
        %p294 = pneg %p64
      $region14: #{transformer_forward.1} parent=11 // pred_check_branch
        %296 = sbr.rel (%p294) target = $region16
      $region15: #{transformer_forward.1} parent=11 // pred_region
        _
      $region16: #{transformer_forward.1} parent=11 // pred_fallthru
        _
      // Predicated region
      $region17: #{transformer_forward.1} parent=11 // pred_check
        %p297 = pneg %p85
      $region18: #{transformer_forward.1} parent=11 // pred_check_branch
        %299 = sbr.rel (%p297) target = $region20
      $region19: #{transformer_forward.1} parent=11 // pred_region
        _
      $region20: #{transformer_forward.1} parent=11 // pred_fallthru
        _
      // Predicated region
      $region21: #{transformer_forward.1} parent=11 // pred_check
        %p300 = pneg %p106
      $region22: #{transformer_forward.1} parent=11 // pred_check_branch
        %302 = sbr.rel (%p300) target = $region24
      $region23: #{transformer_forward.1} parent=11 // pred_region
        _
      $region24: #{transformer_forward.1} parent=11 // pred_fallthru
        _
      // Predicated region
      $region25: #{transformer_forward.1} parent=11 // pred_check
        %p303 = pneg %p127
      $region26: #{transformer_forward.1} parent=11 // pred_check_branch
        %305 = sbr.rel (%p303) target = $region28
      $region27: #{transformer_forward.1} parent=11 // pred_region
        _
      $region28: #{transformer_forward.1} parent=11 // pred_fallthru
        _
      // Predicated region
      $region29: #{transformer_forward.1} parent=11 // pred_check
        %p306 = pneg %p148
      $region30: #{transformer_forward.1} parent=11 // pred_check_branch
        %308 = sbr.rel (%p306) target = $region32
      $region31: #{transformer_forward.1} parent=11 // pred_region
        _
      $region32: #{transformer_forward.1} parent=11 // pred_fallthru
        _
      // Predicated region
      $region33: #{transformer_forward.1} parent=11 // pred_check
        %p309 = pneg %p169
      $region34: #{transformer_forward.1} parent=11 // pred_check_branch
        %311 = sbr.rel (%p309) target = $region36
      $region35: #{transformer_forward.1} parent=11 // pred_region
        _
      $region36: #{transformer_forward.1} parent=11 // pred_fallthru
        _
      // Predicated region
      $region37: #{transformer_forward.1} parent=11 // pred_check
        %p312 = pneg %p190
      $region38: #{transformer_forward.1} parent=11 // pred_check_branch
        %314 = sbr.rel (%p312) target = $region40
      $region39: #{transformer_forward.1} parent=11 // pred_region
        _
      $region40: #{transformer_forward.1} parent=11 // pred_fallthru
        _
      // Predicated region
      $region41: #{transformer_forward.1} parent=11 // pred_check
        %p315 = pneg %p211
      $region42: #{transformer_forward.1} parent=11 // pred_check_branch
        %317 = sbr.rel (%p315) target = $region44
      $region43: #{transformer_forward.1} parent=11 // pred_region
        _
      $region44: #{transformer_forward.1} parent=11 // pred_fallthru
        _
      // Predicated region
      $region45: #{transformer_forward.1} parent=11 // pred_check
        %p318 = pneg %p232
      $region46: #{transformer_forward.1} parent=11 // pred_check_branch
        %320 = sbr.rel (%p318) target = $region48
      $region47: #{transformer_forward.1} parent=11 // pred_region
        _
      $region48: #{transformer_forward.1} parent=11 // pred_fallthru
        _
      // Predicated region
      $region49: #{transformer_forward.1} parent=11 // pred_check
        %p321 = pneg %p253
      $region50: #{transformer_forward.1} parent=11 // pred_check_branch
        %323 = sbr.rel (%p321) target = $region52
      $region51: #{transformer_forward.1} parent=11 // pred_region
        _
      $region52: #{transformer_forward.1} parent=11 // pred_fallthru
        _
    $region12: #{transformer_forward.1} parent=5 // pred_fallthru
      _
    %p324 = scmp.lt.s32.totalorder %s17, 2
    // Predicated region
    $region53: #{transformer_forward.1} parent=5 // pred_check
      %p325 = pneg %p324
    $region54: #{transformer_forward.1} parent=5 // pred_check_branch
      %327 = sbr.rel (%p325) target = $region56
    $region55: #{transformer_forward.1} parent=5 // pred_region
      // Predicated region
      $region57: #{transformer_forward.1} parent=55 // pred_check
        %p328 = pneg %p37
      $region58: #{transformer_forward.1} parent=55 // pred_check_branch
        %330 = sbr.rel (%p328) target = $region60
      $region59: #{transformer_forward.1} parent=55 // pred_region
        %p331 = scmp.lt.s32.totalorder %s17, 1
        %s332 = scalar_select %p331, %s17, 1
        %s333 = smul.addr %s332, 2
        %s334 = smul.addr %s333, 8
        %s335 = scalar_lea.vmem %s0, %s334
      $region60: #{transformer_forward.1} parent=55 // pred_fallthru
        _
    $region56: #{transformer_forward.1} parent=5 // pred_fallthru
      _
    %p336 = scmp.le.s32.totalorder 1, %s17
    %p337 = scmp.lt.s32.totalorder %s17, 3
    %p338 = pnand %p336, %p337
    %p339 = pneg %p338
    // Predicated region
    $region61: #{transformer_forward.1} parent=5 // pred_check
      _
    $region62: #{transformer_forward.1} parent=5 // pred_check_branch
      %341 = sbr.rel (%p338) target = $region64
    $region63: #{transformer_forward.1} parent=5 // pred_region
      %s342 = ssub.s32 %s17, 1
      %p343 = scmp.lt.s32.totalorder %s22, 1
      %s344 = scalar_select %p343, %s22, 1
      %s345 = smul.addr %s344, 2
      %s346 = smul.addr %s345, 8
      %s347 = scalar_lea.vmem %s0, %s346
      %p348 = pneg %p43
      %p349 = pneg %p40
      %p350 = pneg %p64
      %p351 = pneg %p61
      %p352 = pneg %p85
      %p353 = pneg %p82
      %p354 = pneg %p106
      %p355 = pneg %p103
      %p356 = pneg %p127
      %p357 = pneg %p124
      %p358 = pneg %p148
      %p359 = pneg %p145
      %p360 = pneg %p169
      %p361 = pneg %p166
      %p362 = pneg %p190
      %p363 = pneg %p187
      %p364 = pneg %p211
      %p365 = pneg %p208
      %p366 = pneg %p232
      %p367 = pneg %p229
      %p368 = pneg %p253
      %p369 = pneg %p250
      %p370 = pneg %p279
      %p371 = pneg %p276
      %p372 = scmp.lt.s32.totalorder %s22, 1
      %s373 = scalar_select %p372, %s22, 1
      %s374 = smul.addr %s373, 2
      %s375 = smul.addr %s374, 8
      %s376 = scalar_lea.vmem %s11, %s375
      %p377 = scmp.lt.s32.totalorder %s22, 1
      %s378 = scalar_select %p377, %s22, 1
      %s379 = smul.addr %s378, 2
      %s380 = smul.addr %s379, 8
      %s381 = scalar_lea.vmem %s0, %s380
      %p382 = scmp.lt.s32.totalorder %s22, 1
      %s383 = scalar_select %p382, %s22, 1
      %s384 = smul.addr %s383, 2
      %s385 = smul.addr %s384, 8
      %s386 = scalar_lea.vmem %s11, %s385
      %v387 = vld [vmem:[%s381] sm:$0xff]
      %v388 = vld [vmem:[%s381 + $0x8] sm:$0xff]
      %v389 = vld [vmem:[%s7] ss:$4 sm:$0x3]
      %s390 = scalar_lea.vmem %s7, 1
      %v391 = vld [vmem:[%s390] ss:$4 sm:$0x3]
      %s392 = scalar_lea.vmem %s7, 2
      %v393 = vld [vmem:[%s392] ss:$4 sm:$0x3]
      %s394 = scalar_lea.vmem %s7, 3
      %v395 = vld [vmem:[%s394] ss:$4 sm:$0x3]
      %v396 = vld [vmem:[%s1] sm:$0xff]
      %v397 = vld [vmem:[%s1 + $0x8] sm:$0xff]
      %v398 = vld [vmem:[%s1 + $0x10] sm:$0xff]
      %v399 = vld [vmem:[%s1 + $0x18] sm:$0xff]
      %v400 = vld [vmem:[%s1 + $0x20] sm:$0xff]
      %v401 = vld [vmem:[%s1 + $0x28] sm:$0xff]
      %vm402 = vcmask 64512
      %v404 = vsel %vm402, %v396, 0
      %v407 = vsel %vm402, %v397, 0
      %v410 = vsel %vm402, %v398, 0
      %v413 = vsel %vm402, %v399, 0
      %v416 = vsel %vm402, %v400, 0
      %v419 = vsel %vm402, %v401, 0
      %421 = vmatprep.subr.mxu0 %v388
      %422 = vmatpush1.msra.mxu0 %v387
      %423 = vmatprep.subr.mxu0 0.0
      %424 = vmatpush1.msra.mxu0 0.0
      %425 = vmatprep.subr.mxu0 0.0
      %426 = vmatpush1.msra.mxu0 0.0
      %427 = vmatprep.subr.mxu0 0.0
      %428 = vmatpush1.msra.mxu0 0.0
      %429 = vmatprep.subr.mxu0 0.0
      %430 = vmatpush1.msra.mxu0 0.0
      %431 = vmatprep.subr.mxu0 0.0
      %432 = vmatpush1.msra.mxu0 0.0
      %433 = vmatprep.subr.mxu0 0.0
      %434 = vmatpush1.msra.mxu0 0.0
      %435 = vmatprep.subr.mxu0 0.0
      %436 = vmatpush1.msra.mxu0 0.0
      %437 = vmatprep.subr.mxu0 0.0
      %438 = vmatpush1.msra.mxu0 0.0
      %439 = vmatprep.subr.mxu0 0.0
      %440 = vmatpush1.msra.mxu0 0.0
      %441 = vmatprep.subr.mxu0 0.0
      %442 = vmatpush1.msra.mxu0 0.0
      %443 = vmatprep.subr.mxu0 0.0
      %444 = vmatpush1.msra.mxu0 0.0
      %445 = vmatprep.subr.mxu0 0.0
      %446 = vmatpush1.msra.mxu0 0.0
      %447 = vmatprep.subr.mxu0 0.0
      %448 = vmatpush1.msra.mxu0 0.0
      %449 = vmatprep.subr.mxu0 0.0
      %450 = vmatpush1.msra.mxu0 0.0
      %451 = vmatprep.subr.mxu0 0.0
      %452 = vmatpush1.msra.mxu0 0.0
      %453 = vmatprep.subr.mxu0 0.0
      %454 = vmatpush1.msra.mxu0 0.0
      %455 = vmatprep.subr.mxu0 0.0
      %456 = vmatpush1.msra.mxu0 0.0
      %457 = vmatprep.subr.mxu0 0.0
      %458 = vmatpush1.msra.mxu0 0.0
      %459 = vmatprep.subr.mxu0 0.0
      %460 = vmatpush1.msra.mxu0 0.0
      %461 = vmatprep.subr.mxu0 0.0
      %462 = vmatpush1.msra.mxu0 0.0
      %463 = vmatprep.subr.mxu0 0.0
      %464 = vmatpush1.msra.mxu0 0.0
      %465 = vmatprep.subr.mxu0 0.0
      %466 = vmatpush1.msra.mxu0 0.0
      %467 = vmatprep.subr.mxu0 0.0
      %468 = vmatpush1.msra.mxu0 0.0
      %469 = vmatprep.subr.mxu0 0.0
      %470 = vmatpush1.msra.mxu0 0.0
      %471 = vmatprep.subr.mxu0 0.0
      %472 = vmatpush1.msra.mxu0 0.0
      %473 = vmatprep.subr.mxu0 0.0
      %474 = vmatpush1.msra.mxu0 0.0
      %475 = vmatprep.subr.mxu0 0.0
      %476 = vmatpush1.msra.mxu0 0.0
      %477 = vmatprep.subr.mxu0 0.0
      %478 = vmatpush1.msra.mxu0 0.0
      %479 = vmatprep.subr.mxu0 0.0
      %480 = vmatpush1.msra.mxu0 0.0
      %481 = vmatprep.subr.mxu0 0.0
      %482 = vmatpush1.msra.mxu0 0.0
      %483 = vmatprep.subr.mxu0 0.0
      %484 = vmatpush1.msra.mxu0 0.0
      %485 = vmatprep.mubr.f32.mxu0 0.0
      %486 = vmatmul.mubr.f32.gmra.mrb[0].mxu0 %v404
      %v487 = vpop.f32.mrb[0].mxu0
      %v488 = vadd.f32 0.0, %v487
      %v489 = vpop.f32.mrb[0].mxu0
      %v490 = vadd.f32 0.0, %v489
      %491 = vmatprep.mubr.f32.mxu0 0.0
      %492 = vmatmul.mubr.f32.gmra.mrb[0].mxu0 %v407
      %v493 = vpop.f32.mrb[0].mxu0
      %v494 = vadd.f32 0.0, %v493
      %v495 = vpop.f32.mrb[0].mxu0
      %v496 = vadd.f32 0.0, %v495
      %497 = vmatprep.mubr.f32.mxu0 0.0
      %498 = vmatmul.mubr.f32.gmra.mrb[0].mxu0 %v410
      %v499 = vpop.f32.mrb[0].mxu0
      %v500 = vadd.f32 0.0, %v499
      %v501 = vpop.f32.mrb[0].mxu0
      %v502 = vadd.f32 0.0, %v501
      %503 = vmatprep.mubr.f32.mxu0 0.0
      %504 = vmatmul.mubr.f32.gmra.mrb[0].mxu0 %v413
      %v505 = vpop.f32.mrb[0].mxu0
      %v506 = vadd.f32 0.0, %v505
      %v507 = vpop.f32.mrb[0].mxu0
      %v508 = vadd.f32 0.0, %v507
      %509 = vmatprep.mubr.f32.mxu0 0.0
      %510 = vmatmul.mubr.f32.gmra.mrb[0].mxu0 %v416
      %v511 = vpop.f32.mrb[0].mxu0
      %v512 = vadd.f32 0.0, %v511
      %v513 = vpop.f32.mrb[0].mxu0
      %v514 = vadd.f32 0.0, %v513
      %515 = vmatprep.mubr.f32.mxu0 0.0
      %516 = vmatmul.mubr.f32.gmra.mrb[0].mxu0 %v419
      %v517 = vpop.f32.mrb[0].mxu0
      %v518 = vadd.f32 0.0, %v517
      %v519 = vpop.f32.mrb[0].mxu0
      %v520 = vadd.f32 0.0, %v519
      %521 = vdwg.mxu0
      %v522 = vmul.f32 %v488, %v488
      %v523 = vmul.f32 %v490, %v490
      %v524 = vmul.f32 %v494, %v494
      %v525 = vmul.f32 %v496, %v496
      %v526 = vadd.f32 %v522, %v523
      %527 = vadd.xlane.f32.xlu0 %v526
      %v528 = vpop.xlane.xlu0 %527
      %v529 = vadd.f32 %v524, %v525
      %530 = vadd.xlane.f32.xlu0 %v529
      %v531 = vpop.xlane.xlu0 %530
      %v532 = vmax.f32 %v528, 1e-24
      %v533 = vmax.f32 %v531, 1e-24
      %v534 = vrsqrt.pop %v532
      %v535 = vrsqrt.pop %v533
      %v536 = vmul.f32 %v488, %v534
      %v537 = vmul.f32 %v490, %v534
      %v538 = vmul.f32 %v494, %v535
      %v539 = vmul.f32 %v496, %v535
      %v540 = vmul.f32 %v500, %v500
      %v541 = vmul.f32 %v502, %v502
      %v542 = vmul.f32 %v506, %v506
      %v543 = vmul.f32 %v508, %v508
      %v544 = vadd.f32 %v540, %v541
      %545 = vadd.xlane.f32.xlu0 %v544
      %v546 = vpop.xlane.xlu0 %545
      %v547 = vadd.f32 %v542, %v543
      %548 = vadd.xlane.f32.xlu0 %v547
      %v549 = vpop.xlane.xlu0 %548
      %v550 = vmax.f32 %v546, 1e-24
      %v551 = vmax.f32 %v549, 1e-24
      %v552 = vrsqrt.pop %v550
      %v553 = vrsqrt.pop %v551
      %v554 = vmul.f32 %v500, %v552
      %v555 = vmul.f32 %v502, %v552
      %v556 = vmul.f32 %v506, %v553
      %v557 = vmul.f32 %v508, %v553
      %v558 = vld [vmem:[%s2] sm:$0xff]
      %v559 = vld [vmem:[%s2 + $0x8] sm:$0xff]
      %561 = vset.pattern.permute.xlu0 0
      %562 = vperm.xlu0 %561, %v558
      %v563 = vpop.permute.xlu0 %562
      %566 = vset.pattern.permute.xlu0 0
      %567 = vperm.xlu0 %566, %v559
      %v568 = vpop.permute.xlu0 %567
      %v570 = vmul.f32 %v554, %v563
      %v571 = vmul.f32 %v555, %v563
      %v572 = vmul.f32 %v556, %v568
      %v573 = vmul.f32 %v557, %v568
      %v574 = vld [vmem:[%s3] sm:$0xff]
      %v575 = vld [vmem:[%s3 + $0x8] sm:$0xff]
      %576 = vmatprep.subr.mxu0 %v537
      %577 = vmatpush1.xpose.msra.mxu0 %v536
      %578 = vmatprep.subr.mxu0 %v539
      %579 = vmatpush1.xpose.msra.mxu0 %v538
      %580 = vmatprep.subr.mxu0 0.0
      %581 = vmatpush1.xpose.msra.mxu0 0.0
      %582 = vmatprep.subr.mxu0 0.0
      %583 = vmatpush1.xpose.msra.mxu0 0.0
      %584 = vmatprep.subr.mxu0 0.0
      %585 = vmatpush1.xpose.msra.mxu0 0.0
      %586 = vmatprep.subr.mxu0 0.0
      %587 = vmatpush1.xpose.msra.mxu0 0.0
      %588 = vmatprep.subr.mxu0 0.0
      %589 = vmatpush1.xpose.msra.mxu0 0.0
      %590 = vmatprep.subr.mxu0 0.0
      %591 = vmatpush1.xpose.msra.mxu0 0.0
      %592 = vmatprep.subr.mxu0 0.0
      %593 = vmatpush1.xpose.msra.mxu0 0.0
      %594 = vmatprep.subr.mxu0 0.0
      %595 = vmatpush1.xpose.msra.mxu0 0.0
      %596 = vmatprep.subr.mxu0 0.0
      %597 = vmatpush1.xpose.msra.mxu0 0.0
      %598 = vmatprep.subr.mxu0 0.0
      %599 = vmatpush1.xpose.msra.mxu0 0.0
      %600 = vmatprep.subr.mxu0 0.0
      %601 = vmatpush1.xpose.msra.mxu0 0.0
      %602 = vmatprep.subr.mxu0 0.0
      %603 = vmatpush1.xpose.msra.mxu0 0.0
      %604 = vmatprep.subr.mxu0 0.0
      %605 = vmatpush1.xpose.msra.mxu0 0.0
      %606 = vmatprep.subr.mxu0 0.0
      %607 = vmatpush1.xpose.msra.mxu0 0.0
      %608 = vmatprep.subr.mxu0 0.0
      %609 = vmatpush1.xpose.msra.mxu0 0.0
      %610 = vmatprep.subr.mxu0 0.0
      %611 = vmatpush1.xpose.msra.mxu0 0.0
      %612 = vmatprep.subr.mxu0 0.0
      %613 = vmatpush1.xpose.msra.mxu0 0.0
      %614 = vmatprep.subr.mxu0 0.0
      %615 = vmatpush1.xpose.msra.mxu0 0.0
      %616 = vmatprep.subr.mxu0 0.0
      %617 = vmatpush1.xpose.msra.mxu0 0.0
      %618 = vmatprep.subr.mxu0 0.0
      %619 = vmatpush1.xpose.msra.mxu0 0.0
      %620 = vmatprep.subr.mxu0 0.0
      %621 = vmatpush1.xpose.msra.mxu0 0.0
      %622 = vmatprep.subr.mxu0 0.0
      %623 = vmatpush1.xpose.msra.mxu0 0.0
      %624 = vmatprep.subr.mxu0 0.0
      %625 = vmatpush1.xpose.msra.mxu0 0.0
      %626 = vmatprep.subr.mxu0 0.0
      %627 = vmatpush1.xpose.msra.mxu0 0.0
      %628 = vmatprep.subr.mxu0 0.0
      %629 = vmatpush1.xpose.msra.mxu0 0.0
      %630 = vmatprep.subr.mxu0 0.0
      %631 = vmatpush1.xpose.msra.mxu0 0.0
      %632 = vmatprep.subr.mxu0 0.0
      %633 = vmatpush1.xpose.msra.mxu0 0.0
      %634 = vmatprep.subr.mxu0 0.0
      %635 = vmatpush1.xpose.msra.mxu0 0.0
      %636 = vmatprep.subr.mxu0 0.0
      %637 = vmatpush1.xpose.msra.mxu0 0.0
      %638 = vmatprep.subr.mxu0 0.0
      %639 = vmatpush1.xpose.msra.mxu0 0.0
      %640 = vmatprep.mubr.f32.mxu0 %v571
      %641 = vmatmul.mubr.f32.gmra.mrb[0].mxu0 %v570
      %v642 = vpop.f32.mrb[0].mxu0
      %v643 = vadd.f32 %v574, %v642
      %v644 = vpop.f32.mrb[0].mxu0
      %645 = vmatprep.mubr.f32.mxu0 %v573
      %646 = vmatmul.mubr.f32.gmra.mrb[0].mxu0 %v572
      %v647 = vpop.f32.mrb[0].mxu0
      %v648 = vadd.f32 %v575, %v647
      %v649 = vpop.f32.mrb[0].mxu0
      %650 = vdwg.mxu0
      %vm651 = vcmask 130048
      %v652 = vsel %vm651, %v643, -inf
      %653 = vmax.xlane.f32.xlu0 %v652
      %v654 = vpop.xlane.xlu0 %653
      %v655 = vsel %vm651, %v648, -inf
      %656 = vmax.xlane.f32.xlu0 %v655
      %v657 = vpop.xlane.xlu0 %656
      %v658 = vsub.f32 %v643, %v654
      %v659 = vsub.f32 %v648, %v657
      %v660 = vmul.f32 %v658, 1.442695
      %v661 = vpow.pop %v660
      %v662 = vmul.f32 %v659, 1.442695
      %v663 = vpow.pop %v662
      %v664 = vsel %vm651, %v661, 0.0
      %665 = vadd.xlane.f32.xlu0 %v664
      %v666 = vpop.xlane.xlu0 %665
      %v667 = vsel %vm651, %v663, 0.0
      %668 = vadd.xlane.f32.xlu0 %v667
      %v669 = vpop.xlane.xlu0 %668
      %v670 = vrcp.pop %v666
      %v671 = vrcp.pop %v669
      %v672 = vmul.f32 %v661, %v670
      %v673 = vmul.f32 %v663, %v671
      %v675 = vsel %vm651, %v672, 0
      %v678 = vsel %vm651, %v673, 0
      %680 = vmatprep.subr.mxu0 %v514
      %681 = vmatpush1.msra.mxu0 %v512
      %682 = vmatprep.subr.mxu0 %v520
      %683 = vmatpush1.msra.mxu0 %v518
      %684 = vmatprep.subr.mxu0 0.0
      %685 = vmatpush1.msra.mxu0 0.0
      %686 = vmatprep.subr.mxu0 0.0
      %687 = vmatpush1.msra.mxu0 0.0
      %688 = vmatprep.subr.mxu0 0.0
      %689 = vmatpush1.msra.mxu0 0.0
      %690 = vmatprep.subr.mxu0 0.0
      %691 = vmatpush1.msra.mxu0 0.0
      %692 = vmatprep.subr.mxu0 0.0
      %693 = vmatpush1.msra.mxu0 0.0
      %694 = vmatprep.subr.mxu0 0.0
      %695 = vmatpush1.msra.mxu0 0.0
      %696 = vmatprep.subr.mxu0 0.0
      %697 = vmatpush1.msra.mxu0 0.0
      %698 = vmatprep.subr.mxu0 0.0
      %699 = vmatpush1.msra.mxu0 0.0
      %700 = vmatprep.subr.mxu0 0.0
      %701 = vmatpush1.msra.mxu0 0.0
      %702 = vmatprep.subr.mxu0 0.0
      %703 = vmatpush1.msra.mxu0 0.0
      %704 = vmatprep.subr.mxu0 0.0
      %705 = vmatpush1.msra.mxu0 0.0
      %706 = vmatprep.subr.mxu0 0.0
      %707 = vmatpush1.msra.mxu0 0.0
      %708 = vmatprep.subr.mxu0 0.0
      %709 = vmatpush1.msra.mxu0 0.0
      %710 = vmatprep.subr.mxu0 0.0
      %711 = vmatpush1.msra.mxu0 0.0
      %712 = vmatprep.subr.mxu0 0.0
      %713 = vmatpush1.msra.mxu0 0.0
      %714 = vmatprep.subr.mxu0 0.0
      %715 = vmatpush1.msra.mxu0 0.0
      %716 = vmatprep.subr.mxu0 0.0
      %717 = vmatpush1.msra.mxu0 0.0
      %718 = vmatprep.subr.mxu0 0.0
      %719 = vmatpush1.msra.mxu0 0.0
      %720 = vmatprep.subr.mxu0 0.0
      %721 = vmatpush1.msra.mxu0 0.0
      %722 = vmatprep.subr.mxu0 0.0
      %723 = vmatpush1.msra.mxu0 0.0
      %724 = vmatprep.subr.mxu0 0.0
      %725 = vmatpush1.msra.mxu0 0.0
      %726 = vmatprep.subr.mxu0 0.0
      %727 = vmatpush1.msra.mxu0 0.0
      %728 = vmatprep.subr.mxu0 0.0
      %729 = vmatpush1.msra.mxu0 0.0
      %730 = vmatprep.subr.mxu0 0.0
      %731 = vmatpush1.msra.mxu0 0.0
      %732 = vmatprep.subr.mxu0 0.0
      %733 = vmatpush1.msra.mxu0 0.0
      %734 = vmatprep.subr.mxu0 0.0
      %735 = vmatpush1.msra.mxu0 0.0
      %736 = vmatprep.subr.mxu0 0.0
      %737 = vmatpush1.msra.mxu0 0.0
      %738 = vmatprep.subr.mxu0 0.0
      %739 = vmatpush1.msra.mxu0 0.0
      %740 = vmatprep.subr.mxu0 0.0
      %741 = vmatpush1.msra.mxu0 0.0
      %742 = vmatprep.subr.mxu0 0.0
      %743 = vmatpush1.msra.mxu0 0.0
      %744 = vmatprep.mubr.f32.mxu0 0.0
      %745 = vmatmul.mubr.f32.gmra.mrb[0].mxu0 %v675
      %v746 = vpop.f32.mrb[0].mxu0
      %v747 = vadd.f32 0.0, %v746
      %v748 = vpop.f32.mrb[0].mxu0
      %v749 = vadd.f32 0.0, %v748
      %750 = vmatprep.mubr.f32.mxu0 0.0
      %751 = vmatmul.mubr.f32.gmra.mrb[0].mxu0 %v678
      %v752 = vpop.f32.mrb[0].mxu0
      %v753 = vadd.f32 0.0, %v752
      %v754 = vpop.f32.mrb[0].mxu0
      %v755 = vadd.f32 0.0, %v754
      %756 = vdwg.mxu0
      %v757 = vld [vmem:[%s4] sm:$0xff]
      %v758 = vld [vmem:[%s5] sm:$0xff]
      %760 = vset.pattern.permute.xlu0 0
      %761 = vperm.xlu0 %760, %v758
      %v762 = vpop.permute.xlu0 %761
      %v765 = vsel %vm651, %v757, 0
      %767 = vmatprep.subr.mxu0 %v749
      %768 = vmatpush1.msra.mxu0 %v747
      %769 = vmatprep.subr.mxu0 %v755
      %770 = vmatpush1.msra.mxu0 %v753
      %771 = vmatprep.subr.mxu0 0.0
      %772 = vmatpush1.msra.mxu0 0.0
      %773 = vmatprep.subr.mxu0 0.0
      %774 = vmatpush1.msra.mxu0 0.0
      %775 = vmatprep.subr.mxu0 0.0
      %776 = vmatpush1.msra.mxu0 0.0
      %777 = vmatprep.subr.mxu0 0.0
      %778 = vmatpush1.msra.mxu0 0.0
      %779 = vmatprep.subr.mxu0 0.0
      %780 = vmatpush1.msra.mxu0 0.0
      %781 = vmatprep.subr.mxu0 0.0
      %782 = vmatpush1.msra.mxu0 0.0
      %783 = vmatprep.subr.mxu0 0.0
      %784 = vmatpush1.msra.mxu0 0.0
      %785 = vmatprep.subr.mxu0 0.0
      %786 = vmatpush1.msra.mxu0 0.0
      %787 = vmatprep.subr.mxu0 0.0
      %788 = vmatpush1.msra.mxu0 0.0
      %789 = vmatprep.subr.mxu0 0.0
      %790 = vmatpush1.msra.mxu0 0.0
      %791 = vmatprep.subr.mxu0 0.0
      %792 = vmatpush1.msra.mxu0 0.0
      %793 = vmatprep.subr.mxu0 0.0
      %794 = vmatpush1.msra.mxu0 0.0
      %795 = vmatprep.subr.mxu0 0.0
      %796 = vmatpush1.msra.mxu0 0.0
      %797 = vmatprep.subr.mxu0 0.0
      %798 = vmatpush1.msra.mxu0 0.0
      %799 = vmatprep.subr.mxu0 0.0
      %800 = vmatpush1.msra.mxu0 0.0
      %801 = vmatprep.subr.mxu0 0.0
      %802 = vmatpush1.msra.mxu0 0.0
      %803 = vmatprep.subr.mxu0 0.0
      %804 = vmatpush1.msra.mxu0 0.0
      %805 = vmatprep.subr.mxu0 0.0
      %806 = vmatpush1.msra.mxu0 0.0
      %807 = vmatprep.subr.mxu0 0.0
      %808 = vmatpush1.msra.mxu0 0.0
      %809 = vmatprep.subr.mxu0 0.0
      %810 = vmatpush1.msra.mxu0 0.0
      %811 = vmatprep.subr.mxu0 0.0
      %812 = vmatpush1.msra.mxu0 0.0
      %813 = vmatprep.subr.mxu0 0.0
      %814 = vmatpush1.msra.mxu0 0.0
      %815 = vmatprep.subr.mxu0 0.0
      %816 = vmatpush1.msra.mxu0 0.0
      %817 = vmatprep.subr.mxu0 0.0
      %818 = vmatpush1.msra.mxu0 0.0
      %819 = vmatprep.subr.mxu0 0.0
      %820 = vmatpush1.msra.mxu0 0.0
      %821 = vmatprep.subr.mxu0 0.0
      %822 = vmatpush1.msra.mxu0 0.0
      %823 = vmatprep.subr.mxu0 0.0
      %824 = vmatpush1.msra.mxu0 0.0
      %825 = vmatprep.subr.mxu0 0.0
      %826 = vmatpush1.msra.mxu0 0.0
      %827 = vmatprep.subr.mxu0 0.0
      %828 = vmatpush1.msra.mxu0 0.0
      %829 = vmatprep.subr.mxu0 0.0
      %830 = vmatpush1.msra.mxu0 0.0
      %831 = vmatprep.mubr.f32.mxu0 0.0
      %832 = vmatmul.mubr.f32.gmra.mrb[0].mxu0 %v765
      %v833 = vpop.f32.mrb[0].mxu0
      %v834 = vadd.f32 %v762, %v833
      %v835 = vpop.f32.mrb[0].mxu0
      %v836 = vadd.f32 %v762, %v835
      %837 = vdwg.mxu0
      %v838 = vld [vmem:[%s6] sm:$0xff]
      %839 = vrot.lane.b32.xlu0 %v387, 1
      %v840 = vpop.permute.xlu0 %839
      %841 = vrot.lane.b32.xlu0 %v388, 1
      %v842 = vpop.permute.xlu0 %841
      %v843 = vlaneseq
      %v844 = vand.u32 %v843, 127
      %vm845 = vcmp.lt.s32.totalorder %v844, 1
      %v846 = vsel %vm845, %v840, %v842
      %v847 = vsel %vm845, %v842, %v840
      %v849 = vlaneseq
      %v850 = vshrl.u32 %v849, 7
      %v851 = vsub.s32 0, %v850
      %v852 = vrot.slane %v389, %v851
      %v853 = vlaneseq
      %v854 = vshrl.u32 %v853, 7
      %v855 = vsub.s32 1, %v854
      %v856 = vrot.slane %v389, %v855
      %v859 = vmul.f32 %v847, %v852
      %v860 = vmul.f32 %v846, %v856
      %861 = vrot.lane.b32.xlu0 %v387, 127
      %v862 = vpop.permute.xlu0 %861
      %863 = vrot.lane.b32.xlu0 %v388, 127
      %v864 = vpop.permute.xlu0 %863
      %vm865 = vcmp.lt.s32.totalorder %v844, 127
      %v866 = vsel %vm865, %v862, %v864
      %v867 = vsel %vm865, %v864, %v862
      %v869 = vlaneseq
      %v870 = vshrl.u32 %v869, 7
      %v871 = vsub.s32 0, %v870
      %v872 = vrot.slane %v391, %v871
      %v873 = vlaneseq
      %v874 = vshrl.u32 %v873, 7
      %v875 = vsub.s32 1, %v874
      %v876 = vrot.slane %v391, %v875
      %v879 = vmul.f32 %v866, %v872
      %v880 = vmul.f32 %v867, %v876
      %882 = vset.pattern.permute.xlu0 0
      %883 = vperm.xlu0 %882, %v838
      %v884 = vpop.permute.xlu0 %883
      %v886 = vmul.f32 %v859, %v884
      %v887 = vmul.f32 %v860, %v884
      %888 = vset.pattern.permute.xlu0 1
      %889 = vperm.xlu0 %888, %v838
      %v890 = vpop.permute.xlu0 %889
      %v892 = vmul.f32 %v387, %v890
      %v893 = vmul.f32 %v388, %v890
      %v894 = vadd.f32 %v886, %v892
      %v895 = vadd.f32 %v887, %v893
      %896 = vset.pattern.permute.xlu0 2
      %897 = vperm.xlu0 %896, %v838
      %v898 = vpop.permute.xlu0 %897
      %v900 = vmul.f32 %v879, %v898
      %v901 = vmul.f32 %v880, %v898
      %v902 = vadd.f32 %v894, %v900
      %v903 = vadd.f32 %v895, %v901
      %904 = vset.pattern.permute.xlu0 3
      %905 = vperm.xlu0 %904, %v838
      %v906 = vpop.permute.xlu0 %905
      %v908 = vmul.f32 %v859, %v906
      %v909 = vmul.f32 %v860, %v906
      %910 = vset.pattern.permute.xlu0 4
      %911 = vperm.xlu0 %910, %v838
      %v912 = vpop.permute.xlu0 %911
      %v914 = vmul.f32 %v387, %v912
      %v915 = vmul.f32 %v388, %v912
      %v916 = vadd.f32 %v908, %v914
      %v917 = vadd.f32 %v909, %v915
      %918 = vset.pattern.permute.xlu0 5
      %919 = vperm.xlu0 %918, %v838
      %v920 = vpop.permute.xlu0 %919
      %v922 = vmul.f32 %v879, %v920
      %v923 = vmul.f32 %v880, %v920
      %v924 = vadd.f32 %v916, %v922
      %v925 = vadd.f32 %v917, %v923
      %926 = vset.pattern.permute.xlu0 6
      %927 = vperm.xlu0 %926, %v838
      %v928 = vpop.permute.xlu0 %927
      %v930 = vmul.f32 %v859, %v928
      %v931 = vmul.f32 %v860, %v928
      %932 = vset.pattern.permute.xlu0 7
      %933 = vperm.xlu0 %932, %v838
      %v934 = vpop.permute.xlu0 %933
      %v936 = vmul.f32 %v387, %v934
      %v937 = vmul.f32 %v388, %v934
      %v938 = vadd.f32 %v930, %v936
      %v939 = vadd.f32 %v931, %v937
      %940 = vset.pattern.permute.xlu0 8
      %941 = vperm.xlu0 %940, %v838
      %v942 = vpop.permute.xlu0 %941
      %v944 = vmul.f32 %v879, %v942
      %v945 = vmul.f32 %v880, %v942
      %v946 = vadd.f32 %v938, %v944
      %v947 = vadd.f32 %v939, %v945
      %948 = vrot.lane.b32.xlu0 %v902, 16
      %v949 = vpop.permute.xlu0 %948
      %950 = vrot.lane.b32.xlu0 %v903, 16
      %v951 = vpop.permute.xlu0 %950
      %vm952 = vcmp.lt.s32.totalorder %v844, 16
      %v953 = vsel %vm952, %v949, %v951
      %v954 = vsel %vm952, %v951, %v949
      %v956 = vlaneseq
      %v957 = vshrl.u32 %v956, 7
      %v958 = vsub.s32 0, %v957
      %v959 = vrot.slane %v393, %v958
      %v960 = vlaneseq
      %v961 = vshrl.u32 %v960, 7
      %v962 = vsub.s32 1, %v961
      %v963 = vrot.slane %v393, %v962
      %v966 = vmul.f32 %v954, %v959
      %v967 = vmul.f32 %v953, %v963
      %v968 = vadd.f32 %v966, %v924
      %v969 = vadd.f32 %v967, %v925
      %970 = vrot.lane.b32.xlu0 %v946, 112
      %v971 = vpop.permute.xlu0 %970
      %972 = vrot.lane.b32.xlu0 %v947, 112
      %v973 = vpop.permute.xlu0 %972
      %vm974 = vcmp.lt.s32.totalorder %v844, 112
      %v975 = vsel %vm974, %v971, %v973
      %v976 = vsel %vm974, %v973, %v971
      %v978 = vlaneseq
      %v979 = vshrl.u32 %v978, 7
      %v980 = vsub.s32 0, %v979
      %v981 = vrot.slane %v395, %v980
      %v982 = vlaneseq
      %v983 = vshrl.u32 %v982, 7
      %v984 = vsub.s32 1, %v983
      %v985 = vrot.slane %v395, %v984
      %v988 = vmul.f32 %v975, %v981
      %v989 = vmul.f32 %v976, %v985
      %v990 = vadd.f32 %v968, %v988
      %v991 = vadd.f32 %v969, %v989
      %v992 = vadd.f32 %v834, %v990
      %v993 = vadd.f32 %v836, %v991
      %v994 = vadd.f32 %v992, %v387
      %v995 = vadd.f32 %v993, %v388
      loop: start=0, step=1, limit=2
      $region65: #{transformer_forward.1} parent=63 // loop_pre_header
        _
      $region66: #{transformer_forward.1} parent=63 // loop_header
        %s997 = sphi 0, %s1001
        %p998 = scmp.ge.s32.totalorder %s997, 2
        %v1002 = vphi %v994, %v1569
        %v1003 = vphi %v995, %v1570
      $region67: #{transformer_forward.1} parent=63 // loop_header_branch
        %1000 = sbr.rel (%p998) target = $region71
      $region68: #{transformer_forward.1} parent=63 // loop_body
        %s1004 = smul.u32 %s997, 16
        %s1005 = scalar_lea.vmem %s8, %s1004
        %v1006 = vld [vmem:[%s1005] sm:$0xff]
        %v1007 = vld [vmem:[%s1005 + $0x8] sm:$0xff]
        %v1009 = vsel %vm402, %v1006, 0
        %v1012 = vsel %vm402, %v1007, 0
        %1014 = vmatprep.subr.mxu0 %v995
        %1015 = vmatpush1.msra.mxu0 %v994
        %1016 = vmatprep.subr.mxu0 0.0
        %1017 = vmatpush1.msra.mxu0 0.0
        %1018 = vmatprep.subr.mxu0 0.0
        %1019 = vmatpush1.msra.mxu0 0.0
        %1020 = vmatprep.subr.mxu0 0.0
        %1021 = vmatpush1.msra.mxu0 0.0
        %1022 = vmatprep.subr.mxu0 0.0
        %1023 = vmatpush1.msra.mxu0 0.0
        %1024 = vmatprep.subr.mxu0 0.0
        %1025 = vmatpush1.msra.mxu0 0.0
        %1026 = vmatprep.subr.mxu0 0.0
        %1027 = vmatpush1.msra.mxu0 0.0
        %1028 = vmatprep.subr.mxu0 0.0
        %1029 = vmatpush1.msra.mxu0 0.0
        %1030 = vmatprep.subr.mxu0 0.0
        %1031 = vmatpush1.msra.mxu0 0.0
        %1032 = vmatprep.subr.mxu0 0.0
        %1033 = vmatpush1.msra.mxu0 0.0
        %1034 = vmatprep.subr.mxu0 0.0
        %1035 = vmatpush1.msra.mxu0 0.0
        %1036 = vmatprep.subr.mxu0 0.0
        %1037 = vmatpush1.msra.mxu0 0.0
        %1038 = vmatprep.subr.mxu0 0.0
        %1039 = vmatpush1.msra.mxu0 0.0
        %1040 = vmatprep.subr.mxu0 0.0
        %1041 = vmatpush1.msra.mxu0 0.0
        %1042 = vmatprep.subr.mxu0 0.0
        %1043 = vmatpush1.msra.mxu0 0.0
        %1044 = vmatprep.subr.mxu0 0.0
        %1045 = vmatpush1.msra.mxu0 0.0
        %1046 = vmatprep.subr.mxu0 0.0
        %1047 = vmatpush1.msra.mxu0 0.0
        %1048 = vmatprep.subr.mxu0 0.0
        %1049 = vmatpush1.msra.mxu0 0.0
        %1050 = vmatprep.subr.mxu0 0.0
        %1051 = vmatpush1.msra.mxu0 0.0
        %1052 = vmatprep.subr.mxu0 0.0
        %1053 = vmatpush1.msra.mxu0 0.0
        %1054 = vmatprep.subr.mxu0 0.0
        %1055 = vmatpush1.msra.mxu0 0.0
        %1056 = vmatprep.subr.mxu0 0.0
        %1057 = vmatpush1.msra.mxu0 0.0
        %1058 = vmatprep.subr.mxu0 0.0
        %1059 = vmatpush1.msra.mxu0 0.0
        %1060 = vmatprep.subr.mxu0 0.0
        %1061 = vmatpush1.msra.mxu0 0.0
        %1062 = vmatprep.subr.mxu0 0.0
        %1063 = vmatpush1.msra.mxu0 0.0
        %1064 = vmatprep.subr.mxu0 0.0
        %1065 = vmatpush1.msra.mxu0 0.0
        %1066 = vmatprep.subr.mxu0 0.0
        %1067 = vmatpush1.msra.mxu0 0.0
        %1068 = vmatprep.subr.mxu0 0.0
        %1069 = vmatpush1.msra.mxu0 0.0
        %1070 = vmatprep.subr.mxu0 0.0
        %1071 = vmatpush1.msra.mxu0 0.0
        %1072 = vmatprep.subr.mxu0 0.0
        %1073 = vmatpush1.msra.mxu0 0.0
        %1074 = vmatprep.subr.mxu0 0.0
        %1075 = vmatpush1.msra.mxu0 0.0
        %1076 = vmatprep.subr.mxu0 0.0
        %1077 = vmatpush1.msra.mxu0 0.0
        %1078 = vmatprep.mubr.f32.mxu0 0.0
        %1079 = vmatmul.mubr.f32.gmra.mrb[0].mxu0 %v1009
        %v1080 = vpop.f32.mrb[0].mxu0
        %v1081 = vadd.f32 0.0, %v1080
        %v1082 = vpop.f32.mrb[0].mxu0
        %v1083 = vadd.f32 0.0, %v1082
        %1084 = vmatprep.mubr.f32.mxu0 0.0
        %1085 = vmatmul.mubr.f32.gmra.mrb[0].mxu0 %v1012
        %v1086 = vpop.f32.mrb[0].mxu0
        %v1087 = vadd.f32 0.0, %v1086
        %v1088 = vpop.f32.mrb[0].mxu0
        %v1089 = vadd.f32 0.0, %v1088
        %1090 = vdwg.mxu0
        %v1091 = vand.u32 2147483647, %v1081
        %v1092 = vand.u32 2147483647, %v1083
        %v1093 = vand.u32 2147483647, %v1087
        %v1094 = vand.u32 2147483647, %v1089
        %v1095 = vmul.f32 %v1091, 0.70710677
        %v1096 = vmul.f32 %v1092, 0.70710677
        %v1097 = vmul.f32 %v1093, 0.70710677
        %v1098 = vmul.f32 %v1094, 0.70710677
        %v1099 = vmul.f32 %v1095, 0.3275911
        %v1100 = vmul.f32 %v1096, 0.3275911
        %v1101 = vmul.f32 %v1097, 0.3275911
        %v1102 = vmul.f32 %v1098, 0.3275911
        %v1103 = vadd.f32 %v1099, 1.0
        %v1104 = vadd.f32 %v1100, 1.0
        %v1105 = vadd.f32 %v1101, 1.0
        %v1106 = vadd.f32 %v1102, 1.0
        %v1107 = vrcp.pop %v1103
        %v1108 = vmul.f32 1.0, %v1107
        %v1109 = vrcp.pop %v1104
        %v1110 = vmul.f32 1.0, %v1109
        %v1111 = vrcp.pop %v1105
        %v1112 = vmul.f32 1.0, %v1111
        %v1113 = vrcp.pop %v1106
        %v1114 = vmul.f32 1.0, %v1113
        %v1115 = vmul.f32 %v1108, 1.0614054
        %v1116 = vmul.f32 %v1110, 1.0614054
        %v1117 = vmul.f32 %v1112, 1.0614054
        %v1118 = vmul.f32 %v1114, 1.0614054
        %v1119 = vsub.f32 %v1115, 1.4531521
        %v1120 = vsub.f32 %v1116, 1.4531521
        %v1121 = vsub.f32 %v1117, 1.4531521
        %v1122 = vsub.f32 %v1118, 1.4531521
        %v1123 = vmul.f32 %v1119, %v1108
        %v1124 = vmul.f32 %v1120, %v1110
        %v1125 = vmul.f32 %v1121, %v1112
        %v1126 = vmul.f32 %v1122, %v1114
        %v1127 = vadd.f32 %v1123, 1.4214138
        %v1128 = vadd.f32 %v1124, 1.4214138
        %v1129 = vadd.f32 %v1125, 1.4214138
        %v1130 = vadd.f32 %v1126, 1.4214138
        %v1131 = vmul.f32 %v1127, %v1108
        %v1132 = vmul.f32 %v1128, %v1110
        %v1133 = vmul.f32 %v1129, %v1112
        %v1134 = vmul.f32 %v1130, %v1114
        %v1135 = vsub.f32 %v1131, 0.28449672
        %v1136 = vsub.f32 %v1132, 0.28449672
        %v1137 = vsub.f32 %v1133, 0.28449672
        %v1138 = vsub.f32 %v1134, 0.28449672
        %v1139 = vmul.f32 %v1135, %v1108
        %v1140 = vmul.f32 %v1136, %v1110
        %v1141 = vmul.f32 %v1137, %v1112
        %v1142 = vmul.f32 %v1138, %v1114
        %v1143 = vadd.f32 %v1139, 0.2548296
        %v1144 = vadd.f32 %v1140, 0.2548296
        %v1145 = vadd.f32 %v1141, 0.2548296
        %v1146 = vadd.f32 %v1142, 0.2548296
        %v1147 = vmul.f32 %v1143, %v1108
        %v1148 = vmul.f32 %v1144, %v1110
        %v1149 = vmul.f32 %v1145, %v1112
        %v1150 = vmul.f32 %v1146, %v1114
        %v1151 = vmax.f32 %v1081, 0.0
        %v1152 = vmax.f32 %v1083, 0.0
        %v1153 = vmax.f32 %v1087, 0.0
        %v1154 = vmax.f32 %v1089, 0.0
        %v1155 = vmul.f32 %v1095, 0.70710677
        %v1156 = vmul.f32 %v1096, 0.70710677
        %v1157 = vmul.f32 %v1097, 0.70710677
        %v1158 = vmul.f32 %v1098, 0.70710677
        %v1159 = vmul.f32 %v1155, %v1147
        %v1160 = vmul.f32 %v1156, %v1148
        %v1161 = vmul.f32 %v1157, %v1149
        %v1162 = vmul.f32 %v1158, %v1150
        %v1163 = vsub.f32 0.0, %v1095
        %v1164 = vsub.f32 0.0, %v1096
        %v1165 = vsub.f32 0.0, %v1097
        %v1166 = vsub.f32 0.0, %v1098
        %v1167 = vmul.f32 %v1163, %v1095
        %v1168 = vmul.f32 %v1164, %v1096
        %v1169 = vmul.f32 %v1165, %v1097
        %v1170 = vmul.f32 %v1166, %v1098
        %v1171 = vmul.f32 %v1167, 1.442695
        %v1172 = vpow.pop %v1171
        %v1173 = vmul.f32 %v1168, 1.442695
        %v1174 = vpow.pop %v1173
        %v1175 = vmul.f32 %v1169, 1.442695
        %v1176 = vpow.pop %v1175
        %v1177 = vmul.f32 %v1170, 1.442695
        %v1178 = vpow.pop %v1177
        %v1179 = vmul.f32 %v1159, %v1172
        %v1180 = vmul.f32 %v1160, %v1174
        %v1181 = vmul.f32 %v1161, %v1176
        %v1182 = vmul.f32 %v1162, %v1178
        %v1183 = vsub.f32 %v1151, %v1179
        %v1184 = vsub.f32 %v1152, %v1180
        %v1185 = vsub.f32 %v1153, %v1181
        %v1186 = vsub.f32 %v1154, %v1182
        %s1187 = scalar_lea.vmem %s9, %s1004
        %v1188 = vld [vmem:[%s1187] sm:$0xff]
        %v1189 = vld [vmem:[%s1187 + $0x8] sm:$0xff]
        %1190 = vrot.lane.b32.xlu0 %v1183, 1
        %v1191 = vpop.permute.xlu0 %1190
        %1192 = vrot.lane.b32.xlu0 %v1185, 1
        %v1193 = vpop.permute.xlu0 %1192
        %1194 = vrot.lane.b32.xlu0 %v1184, 1
        %v1195 = vpop.permute.xlu0 %1194
        %1196 = vrot.lane.b32.xlu0 %v1186, 1
        %v1197 = vpop.permute.xlu0 %1196
        %v1198 = vsel %vm845, %v1191, %v1195
        %v1199 = vsel %vm845, %v1193, %v1197
        %v1200 = vsel %vm845, %v1195, %v1191
        %v1201 = vsel %vm845, %v1197, %v1193
        %v1202 = vmul.f32 %v1200, %v852
        %v1203 = vmul.f32 %v1198, %v856
        %v1204 = vmul.f32 %v1201, %v852
        %v1205 = vmul.f32 %v1199, %v856
        %1206 = vrot.lane.b32.xlu0 %v1183, 127
        %v1207 = vpop.permute.xlu0 %1206
        %1208 = vrot.lane.b32.xlu0 %v1185, 127
        %v1209 = vpop.permute.xlu0 %1208
        %1210 = vrot.lane.b32.xlu0 %v1184, 127
        %v1211 = vpop.permute.xlu0 %1210
        %1212 = vrot.lane.b32.xlu0 %v1186, 127
        %v1213 = vpop.permute.xlu0 %1212
        %v1214 = vsel %vm865, %v1207, %v1211
        %v1215 = vsel %vm865, %v1209, %v1213
        %v1216 = vsel %vm865, %v1211, %v1207
        %v1217 = vsel %vm865, %v1213, %v1209
        %v1218 = vmul.f32 %v1214, %v872
        %v1219 = vmul.f32 %v1216, %v876
        %v1220 = vmul.f32 %v1215, %v872
        %v1221 = vmul.f32 %v1217, %v876
        %1223 = vset.pattern.permute.xlu0 0
        %1224 = vperm.xlu0 %1223, %v1188
        %v1225 = vpop.permute.xlu0 %1224
        %1228 = vset.pattern.permute.xlu0 0
        %1229 = vperm.xlu0 %1228, %v1189
        %v1230 = vpop.permute.xlu0 %1229
        %v1232 = vmul.f32 %v1202, %v1225
        %v1233 = vmul.f32 %v1203, %v1225
        %v1234 = vmul.f32 %v1204, %v1230
        %v1235 = vmul.f32 %v1205, %v1230
        %1236 = vset.pattern.permute.xlu0 1
        %1237 = vperm.xlu0 %1236, %v1188
        %v1238 = vpop.permute.xlu0 %1237
        %1240 = vset.pattern.permute.xlu0 1
        %1241 = vperm.xlu0 %1240, %v1189
        %v1242 = vpop.permute.xlu0 %1241
        %v1244 = vmul.f32 %v1183, %v1238
        %v1245 = vmul.f32 %v1184, %v1238
        %v1246 = vmul.f32 %v1185, %v1242
        %v1247 = vmul.f32 %v1186, %v1242
        %v1248 = vadd.f32 %v1232, %v1244
        %v1249 = vadd.f32 %v1233, %v1245
        %v1250 = vadd.f32 %v1234, %v1246
        %v1251 = vadd.f32 %v1235, %v1247
        %1252 = vset.pattern.permute.xlu0 2
        %1253 = vperm.xlu0 %1252, %v1188
        %v1254 = vpop.permute.xlu0 %1253
        %1256 = vset.pattern.permute.xlu0 2
        %1257 = vperm.xlu0 %1256, %v1189
        %v1258 = vpop.permute.xlu0 %1257
        %v1260 = vmul.f32 %v1218, %v1254
        %v1261 = vmul.f32 %v1219, %v1254
        %v1262 = vmul.f32 %v1220, %v1258
        %v1263 = vmul.f32 %v1221, %v1258
        %v1264 = vadd.f32 %v1248, %v1260
        %v1265 = vadd.f32 %v1249, %v1261
        %v1266 = vadd.f32 %v1250, %v1262
        %v1267 = vadd.f32 %v1251, %v1263
        %1268 = vset.pattern.permute.xlu0 3
        %1269 = vperm.xlu0 %1268, %v1188
        %v1270 = vpop.permute.xlu0 %1269
        %1272 = vset.pattern.permute.xlu0 3
        %1273 = vperm.xlu0 %1272, %v1189
        %v1274 = vpop.permute.xlu0 %1273
        %v1276 = vmul.f32 %v1202, %v1270
        %v1277 = vmul.f32 %v1203, %v1270
        %v1278 = vmul.f32 %v1204, %v1274
        %v1279 = vmul.f32 %v1205, %v1274
        %1280 = vset.pattern.permute.xlu0 4
        %1281 = vperm.xlu0 %1280, %v1188
        %v1282 = vpop.permute.xlu0 %1281
        %1284 = vset.pattern.permute.xlu0 4
        %1285 = vperm.xlu0 %1284, %v1189
        %v1286 = vpop.permute.xlu0 %1285
        %v1288 = vmul.f32 %v1183, %v1282
        %v1289 = vmul.f32 %v1184, %v1282
        %v1290 = vmul.f32 %v1185, %v1286
        %v1291 = vmul.f32 %v1186, %v1286
        %v1292 = vadd.f32 %v1276, %v1288
        %v1293 = vadd.f32 %v1277, %v1289
        %v1294 = vadd.f32 %v1278, %v1290
        %v1295 = vadd.f32 %v1279, %v1291
        %1296 = vset.pattern.permute.xlu0 5
        %1297 = vperm.xlu0 %1296, %v1188
        %v1298 = vpop.permute.xlu0 %1297
        %1300 = vset.pattern.permute.xlu0 5
        %1301 = vperm.xlu0 %1300, %v1189
        %v1302 = vpop.permute.xlu0 %1301
        %v1304 = vmul.f32 %v1218, %v1298
        %v1305 = vmul.f32 %v1219, %v1298
        %v1306 = vmul.f32 %v1220, %v1302
        %v1307 = vmul.f32 %v1221, %v1302
        %v1308 = vadd.f32 %v1292, %v1304
        %v1309 = vadd.f32 %v1293, %v1305
        %v1310 = vadd.f32 %v1294, %v1306
        %v1311 = vadd.f32 %v1295, %v1307
        %1312 = vset.pattern.permute.xlu0 6
        %1313 = vperm.xlu0 %1312, %v1188
        %v1314 = vpop.permute.xlu0 %1313
        %1316 = vset.pattern.permute.xlu0 6
        %1317 = vperm.xlu0 %1316, %v1189
        %v1318 = vpop.permute.xlu0 %1317
        %v1320 = vmul.f32 %v1202, %v1314
        %v1321 = vmul.f32 %v1203, %v1314
        %v1322 = vmul.f32 %v1204, %v1318
        %v1323 = vmul.f32 %v1205, %v1318
        %1324 = vset.pattern.permute.xlu0 7
        %1325 = vperm.xlu0 %1324, %v1188
        %v1326 = vpop.permute.xlu0 %1325
        %1328 = vset.pattern.permute.xlu0 7
        %1329 = vperm.xlu0 %1328, %v1189
        %v1330 = vpop.permute.xlu0 %1329
        %v1332 = vmul.f32 %v1183, %v1326
        %v1333 = vmul.f32 %v1184, %v1326
        %v1334 = vmul.f32 %v1185, %v1330
        %v1335 = vmul.f32 %v1186, %v1330
        %v1336 = vadd.f32 %v1320, %v1332
        %v1337 = vadd.f32 %v1321, %v1333
        %v1338 = vadd.f32 %v1322, %v1334
        %v1339 = vadd.f32 %v1323, %v1335
        %1340 = vset.pattern.permute.xlu0 8
        %1341 = vperm.xlu0 %1340, %v1188
        %v1342 = vpop.permute.xlu0 %1341
        %1344 = vset.pattern.permute.xlu0 8
        %1345 = vperm.xlu0 %1344, %v1189
        %v1346 = vpop.permute.xlu0 %1345
        %v1348 = vmul.f32 %v1218, %v1342
        %v1349 = vmul.f32 %v1219, %v1342
        %v1350 = vmul.f32 %v1220, %v1346
        %v1351 = vmul.f32 %v1221, %v1346
        %v1352 = vadd.f32 %v1336, %v1348
        %v1353 = vadd.f32 %v1337, %v1349
        %v1354 = vadd.f32 %v1338, %v1350
        %v1355 = vadd.f32 %v1339, %v1351
        %1356 = vrot.lane.b32.xlu0 %v1264, 16
        %v1357 = vpop.permute.xlu0 %1356
        %1358 = vrot.lane.b32.xlu0 %v1266, 16
        %v1359 = vpop.permute.xlu0 %1358
        %1360 = vrot.lane.b32.xlu0 %v1265, 16
        %v1361 = vpop.permute.xlu0 %1360
        %1362 = vrot.lane.b32.xlu0 %v1267, 16
        %v1363 = vpop.permute.xlu0 %1362
        %v1364 = vsel %vm952, %v1357, %v1361
        %v1365 = vsel %vm952, %v1359, %v1363
        %v1366 = vsel %vm952, %v1361, %v1357
        %v1367 = vsel %vm952, %v1363, %v1359
        %v1368 = vmul.f32 %v1366, %v959
        %v1369 = vmul.f32 %v1364, %v963
        %v1370 = vmul.f32 %v1367, %v959
        %v1371 = vmul.f32 %v1365, %v963
        %v1372 = vadd.f32 %v1368, %v1308
        %v1373 = vadd.f32 %v1369, %v1309
        %v1374 = vadd.f32 %v1370, %v1310
        %v1375 = vadd.f32 %v1371, %v1311
        %1376 = vrot.lane.b32.xlu0 %v1352, 112
        %v1377 = vpop.permute.xlu0 %1376
        %1378 = vrot.lane.b32.xlu0 %v1354, 112
        %v1379 = vpop.permute.xlu0 %1378
        %1380 = vrot.lane.b32.xlu0 %v1353, 112
        %v1381 = vpop.permute.xlu0 %1380
        %1382 = vrot.lane.b32.xlu0 %v1355, 112
        %v1383 = vpop.permute.xlu0 %1382
        %v1384 = vsel %vm974, %v1377, %v1381
        %v1385 = vsel %vm974, %v1379, %v1383
        %v1386 = vsel %vm974, %v1381, %v1377
        %v1387 = vsel %vm974, %v1383, %v1379
        %v1388 = vmul.f32 %v1384, %v981
        %v1389 = vmul.f32 %v1386, %v985
        %v1390 = vmul.f32 %v1385, %v981
        %v1391 = vmul.f32 %v1387, %v985
        %v1392 = vadd.f32 %v1372, %v1388
        %v1393 = vadd.f32 %v1373, %v1389
        %v1394 = vadd.f32 %v1374, %v1390
        %v1395 = vadd.f32 %v1375, %v1391
        %v1396 = vand.u32 2147483647, %v1392
        %v1397 = vand.u32 2147483647, %v1393
        %v1398 = vand.u32 2147483647, %v1394
        %v1399 = vand.u32 2147483647, %v1395
        %v1400 = vmul.f32 %v1396, 0.70710677
        %v1401 = vmul.f32 %v1397, 0.70710677
        %v1402 = vmul.f32 %v1398, 0.70710677
        %v1403 = vmul.f32 %v1399, 0.70710677
        %v1404 = vmul.f32 %v1400, 0.3275911
        %v1405 = vmul.f32 %v1401, 0.3275911
        %v1406 = vmul.f32 %v1402, 0.3275911
        %v1407 = vmul.f32 %v1403, 0.3275911
        %v1408 = vadd.f32 %v1404, 1.0
        %v1409 = vadd.f32 %v1405, 1.0
        %v1410 = vadd.f32 %v1406, 1.0
        %v1411 = vadd.f32 %v1407, 1.0
        %v1412 = vrcp.pop %v1408
        %v1413 = vmul.f32 1.0, %v1412
        %v1414 = vrcp.pop %v1409
        %v1415 = vmul.f32 1.0, %v1414
        %v1416 = vrcp.pop %v1410
        %v1417 = vmul.f32 1.0, %v1416
        %v1418 = vrcp.pop %v1411
        %v1419 = vmul.f32 1.0, %v1418
        %v1420 = vmul.f32 %v1413, 1.0614054
        %v1421 = vmul.f32 %v1415, 1.0614054
        %v1422 = vmul.f32 %v1417, 1.0614054
        %v1423 = vmul.f32 %v1419, 1.0614054
        %v1424 = vsub.f32 %v1420, 1.4531521
        %v1425 = vsub.f32 %v1421, 1.4531521
        %v1426 = vsub.f32 %v1422, 1.4531521
        %v1427 = vsub.f32 %v1423, 1.4531521
        %v1428 = vmul.f32 %v1424, %v1413
        %v1429 = vmul.f32 %v1425, %v1415
        %v1430 = vmul.f32 %v1426, %v1417
        %v1431 = vmul.f32 %v1427, %v1419
        %v1432 = vadd.f32 %v1428, 1.4214138
        %v1433 = vadd.f32 %v1429, 1.4214138
        %v1434 = vadd.f32 %v1430, 1.4214138
        %v1435 = vadd.f32 %v1431, 1.4214138
        %v1436 = vmul.f32 %v1432, %v1413
        %v1437 = vmul.f32 %v1433, %v1415
        %v1438 = vmul.f32 %v1434, %v1417
        %v1439 = vmul.f32 %v1435, %v1419
        %v1440 = vsub.f32 %v1436, 0.28449672
        %v1441 = vsub.f32 %v1437, 0.28449672
        %v1442 = vsub.f32 %v1438, 0.28449672
        %v1443 = vsub.f32 %v1439, 0.28449672
        %v1444 = vmul.f32 %v1440, %v1413
        %v1445 = vmul.f32 %v1441, %v1415
        %v1446 = vmul.f32 %v1442, %v1417
        %v1447 = vmul.f32 %v1443, %v1419
        %v1448 = vadd.f32 %v1444, 0.2548296
        %v1449 = vadd.f32 %v1445, 0.2548296
        %v1450 = vadd.f32 %v1446, 0.2548296
        %v1451 = vadd.f32 %v1447, 0.2548296
        %v1452 = vmul.f32 %v1448, %v1413
        %v1453 = vmul.f32 %v1449, %v1415
        %v1454 = vmul.f32 %v1450, %v1417
        %v1455 = vmul.f32 %v1451, %v1419
        %v1456 = vmax.f32 %v1392, 0.0
        %v1457 = vmax.f32 %v1393, 0.0
        %v1458 = vmax.f32 %v1394, 0.0
        %v1459 = vmax.f32 %v1395, 0.0
        %v1460 = vmul.f32 %v1400, 0.70710677
        %v1461 = vmul.f32 %v1401, 0.70710677
        %v1462 = vmul.f32 %v1402, 0.70710677
        %v1463 = vmul.f32 %v1403, 0.70710677
        %v1464 = vmul.f32 %v1460, %v1452
        %v1465 = vmul.f32 %v1461, %v1453
        %v1466 = vmul.f32 %v1462, %v1454
        %v1467 = vmul.f32 %v1463, %v1455
        %v1468 = vsub.f32 0.0, %v1400
        %v1469 = vsub.f32 0.0, %v1401
        %v1470 = vsub.f32 0.0, %v1402
        %v1471 = vsub.f32 0.0, %v1403
        %v1472 = vmul.f32 %v1468, %v1400
        %v1473 = vmul.f32 %v1469, %v1401
        %v1474 = vmul.f32 %v1470, %v1402
        %v1475 = vmul.f32 %v1471, %v1403
        %v1476 = vmul.f32 %v1472, 1.442695
        %v1477 = vpow.pop %v1476
        %v1478 = vmul.f32 %v1473, 1.442695
        %v1479 = vpow.pop %v1478
        %v1480 = vmul.f32 %v1474, 1.442695
        %v1481 = vpow.pop %v1480
        %v1482 = vmul.f32 %v1475, 1.442695
        %v1483 = vpow.pop %v1482
        %v1484 = vmul.f32 %v1464, %v1477
        %v1485 = vmul.f32 %v1465, %v1479
        %v1486 = vmul.f32 %v1466, %v1481
        %v1487 = vmul.f32 %v1467, %v1483
        %v1488 = vsub.f32 %v1456, %v1484
        %v1489 = vsub.f32 %v1457, %v1485
        %v1490 = vsub.f32 %v1458, %v1486
        %v1491 = vsub.f32 %v1459, %v1487
        %s1492 = smul.u32 %s997, 8
        %s1493 = scalar_lea.vmem %s10, %s1492
        %v1494 = vld [vmem:[%s1493] sm:$0xff]
        %v1496 = vsel %vm651, %v1494, 0
        %1498 = vmatprep.subr.mxu0 %v1489
        %1499 = vmatpush1.msra.mxu0 %v1488
        %1500 = vmatprep.subr.mxu0 %v1491
        %1501 = vmatpush1.msra.mxu0 %v1490
        %1502 = vmatprep.subr.mxu0 0.0
        %1503 = vmatpush1.msra.mxu0 0.0
        %1504 = vmatprep.subr.mxu0 0.0
        %1505 = vmatpush1.msra.mxu0 0.0
        %1506 = vmatprep.subr.mxu0 0.0
        %1507 = vmatpush1.msra.mxu0 0.0
        %1508 = vmatprep.subr.mxu0 0.0
        %1509 = vmatpush1.msra.mxu0 0.0
        %1510 = vmatprep.subr.mxu0 0.0
        %1511 = vmatpush1.msra.mxu0 0.0
        %1512 = vmatprep.subr.mxu0 0.0
        %1513 = vmatpush1.msra.mxu0 0.0
        %1514 = vmatprep.subr.mxu0 0.0
        %1515 = vmatpush1.msra.mxu0 0.0
        %1516 = vmatprep.subr.mxu0 0.0
        %1517 = vmatpush1.msra.mxu0 0.0
        %1518 = vmatprep.subr.mxu0 0.0
        %1519 = vmatpush1.msra.mxu0 0.0
        %1520 = vmatprep.subr.mxu0 0.0
        %1521 = vmatpush1.msra.mxu0 0.0
        %1522 = vmatprep.subr.mxu0 0.0
        %1523 = vmatpush1.msra.mxu0 0.0
        %1524 = vmatprep.subr.mxu0 0.0
        %1525 = vmatpush1.msra.mxu0 0.0
        %1526 = vmatprep.subr.mxu0 0.0
        %1527 = vmatpush1.msra.mxu0 0.0
        %1528 = vmatprep.subr.mxu0 0.0
        %1529 = vmatpush1.msra.mxu0 0.0
        %1530 = vmatprep.subr.mxu0 0.0
        %1531 = vmatpush1.msra.mxu0 0.0
        %1532 = vmatprep.subr.mxu0 0.0
        %1533 = vmatpush1.msra.mxu0 0.0
        %1534 = vmatprep.subr.mxu0 0.0
        %1535 = vmatpush1.msra.mxu0 0.0
        %1536 = vmatprep.subr.mxu0 0.0
        %1537 = vmatpush1.msra.mxu0 0.0
        %1538 = vmatprep.subr.mxu0 0.0
        %1539 = vmatpush1.msra.mxu0 0.0
        %1540 = vmatprep.subr.mxu0 0.0
        %1541 = vmatpush1.msra.mxu0 0.0
        %1542 = vmatprep.subr.mxu0 0.0
        %1543 = vmatpush1.msra.mxu0 0.0
        %1544 = vmatprep.subr.mxu0 0.0
        %1545 = vmatpush1.msra.mxu0 0.0
        %1546 = vmatprep.subr.mxu0 0.0
        %1547 = vmatpush1.msra.mxu0 0.0
        %1548 = vmatprep.subr.mxu0 0.0
        %1549 = vmatpush1.msra.mxu0 0.0
        %1550 = vmatprep.subr.mxu0 0.0
        %1551 = vmatpush1.msra.mxu0 0.0
        %1552 = vmatprep.subr.mxu0 0.0
        %1553 = vmatpush1.msra.mxu0 0.0
        %1554 = vmatprep.subr.mxu0 0.0
        %1555 = vmatpush1.msra.mxu0 0.0
        %1556 = vmatprep.subr.mxu0 0.0
        %1557 = vmatpush1.msra.mxu0 0.0
        %1558 = vmatprep.subr.mxu0 0.0
        %1559 = vmatpush1.msra.mxu0 0.0
        %1560 = vmatprep.subr.mxu0 0.0
        %1561 = vmatpush1.msra.mxu0 0.0
        %1562 = vmatprep.mubr.f32.mxu0 0.0
        %1563 = vmatmul.mubr.f32.gmra.mrb[0].mxu0 %v1496
        %v1564 = vpop.f32.mrb[0].mxu0
        %v1565 = vadd.f32 0.0, %v1564
        %v1566 = vpop.f32.mrb[0].mxu0
        %v1567 = vadd.f32 0.0, %v1566
        %1568 = vdwg.mxu0
        %v1569 = vadd.f32 %v1002, %v1565
        %v1570 = vadd.f32 %v1003, %v1567
      $region69: #{transformer_forward.1} parent=63 // loop_footer
        %s1001 = sadd.s32 1, %s997
      $region70: #{transformer_forward.1} parent=63 // loop_footer_branch
        %996 = sbr.rel target = $region66
      $region71: #{transformer_forward.1} parent=63 // loop_exit
        _
      %1571 = vst [vmem:[%s386] sm:$0xff] %v1002
      %1572 = vst [vmem:[%s386 + $0x8] sm:$0xff] %v1003
      %p1573 = scmp.lt.s32.totalorder %s22, 1
      %s1574 = scalar_select %p1573, %s22, 1
      %s1575 = smul.addr %s1574, 2
      %s1576 = smul.addr %s1575, 8
      %s1577 = scalar_lea.vmem %s11, %s1576
      // Predicated region
      $region72: #{transformer_forward.1} parent=63 // pred_check
        %p1578 = pneg %p276
      $region73: #{transformer_forward.1} parent=63 // pred_check_branch
        %1580 = sbr.rel (%p1578) target = $region75
      $region74: #{transformer_forward.1} parent=63 // pred_region
        _
      $region75: #{transformer_forward.1} parent=63 // pred_fallthru
        _
    $region64: #{transformer_forward.1} parent=5 // pred_fallthru
      _
    %p1581 = scmp.le.s32.totalorder 2, %s17
    // Predicated region
    $region76: #{transformer_forward.1} parent=5 // pred_check
      %p1582 = pneg %p1581
    $region77: #{transformer_forward.1} parent=5 // pred_check_branch
      %1584 = sbr.rel (%p1582) target = $region79
    $region78: #{transformer_forward.1} parent=5 // pred_region
      %s1585 = ssub.s32 %s17, 2
      // Predicated region
      $region80: #{transformer_forward.1} parent=78 // pred_check
        %p1586 = pneg %p282
      $region81: #{transformer_forward.1} parent=78 // pred_check_branch
        %1588 = sbr.rel (%p1586) target = $region83
      $region82: #{transformer_forward.1} parent=78 // pred_region
        %p1589 = scmp.lt.s32.totalorder %s23, 1
        %s1590 = scalar_select %p1589, %s23, 1
        %s1591 = smul.addr %s1590, 2
        %s1592 = smul.addr %s1591, 8
        %s1593 = scalar_lea.vmem %s11, %s1592
      $region83: #{transformer_forward.1} parent=78 // pred_fallthru
        _
    $region79: #{transformer_forward.1} parent=5 // pred_fallthru
      _
  $region6: #{transformer_forward.1} parent=0 // loop_footer
    %s21 = sadd.s32 1, %s17
  $region7: #{transformer_forward.1} parent=0 // loop_footer_branch
    %16 = sbr.rel target = $region3
  $region8: #{transformer_forward.1} parent=0 // loop_exit
    _

</llo_original>
